<compile_context>
chip_gen: v6e
topology: v6e:2x2x1
jax: 0.10.0
libtpu: 0.0.40
codegen_flags: <defaults>
</compile_context>

<pallas_src>
import functools

import jax
import jax.numpy as jnp
import numpy as np
from jax.experimental import pallas as pl
from jax.experimental.pallas import tpu as pltpu

_LANE = 128     # lane width (last-dim alignment target)
_SUBLANE = 8    # f32 sublane rows


def _round_up(n, m):
    return (n + m - 1) // m * m


# ----------------------------------------------------------------------------
# Pallas kernel: one LSTM layer over a TT-timestep block, LayerNorm applied
# once per block (off the serial recurrence).
# ----------------------------------------------------------------------------
def _lstm_ln_kernel(x_ref, wih_ref, whh_ref, b_ref, gamma_ref, beta_ref,
                    out_ref, h_sc, c_sc, gx_sc, hblk_sc,
                    *, hidden, hidden_padded, eps):
    Hp = hidden_padded
    TT, B, Dp = x_ref.shape

    @pl.when(pl.program_id(0) == 0)
    def _():
        h_sc[...] = jnp.zeros_like(h_sc)
        c_sc[...] = jnp.zeros_like(c_sc)

    # ---- Hoisted input projection: ONE (TT*B, Dp) x (Dp, 4Hp) MXU matmul per
    #      block, bias fused, written to an explicit VMEM scratch so it is not
    #      a live traced value across the unrolled recurrence.
    in_dtype = wih_ref.dtype
    x_blk = x_ref[...].reshape(TT * B, Dp).astype(in_dtype)
    gx = jnp.dot(x_blk, wih_ref[...], preferred_element_type=jnp.float32)
    gx_sc[...] = (gx + b_ref[...]).reshape(TT, B, 4 * Hp)

    whh = whh_ref[...]                       # (Hp, 4Hp), held across the loop
    rec_dtype = whh.dtype

    # ---- Serial recurrence: only h @ W_hh^T + gate math + state update stay
    #      on the per-timestep critical path.  Raw h goes to a block scratch.
    def step(s, carry):
        h, c = carry                          # (B, Hp) f32 each
        gates = gx_sc[s] + jnp.dot(h.astype(rec_dtype), whh,
                                   preferred_element_type=jnp.float32)
        # PyTorch gate order: i, f, g, o (each slice lane-aligned: Hp % 128 == 0)
        i_g = jax.nn.sigmoid(gates[:, 0 * Hp:1 * Hp])
        f_g = jax.nn.sigmoid(gates[:, 1 * Hp:2 * Hp])
        g_g = jnp.tanh(gates[:, 2 * Hp:3 * Hp])
        o_g = jax.nn.sigmoid(gates[:, 3 * Hp:4 * Hp])
        c_new = f_g * c + i_g * g_g
        h_new = o_g * jnp.tanh(c_new)
        hblk_sc[s] = h_new
        return h_new, c_new

    h_fin, c_fin = jax.lax.fori_loop(0, TT, step, (h_sc[...], c_sc[...]),
                                     unroll=True)
    h_sc[...] = h_fin
    c_sc[...] = c_fin

    # ---- Block-level LayerNorm over the TRUE hidden width (padded columns of
    #      h are exactly zero by construction) + one lane-dense block store.
    #      E[x^2]-E[x]^2 form avoids any masking of the padded lanes.
    hb = hblk_sc[...]                                       # (TT, B, Hp) f32
    inv_h = 1.0 / float(hidden)
    mean = jnp.sum(hb, axis=-1, keepdims=True) * inv_h
    mean_sq = jnp.sum(hb * hb, axis=-1, keepdims=True) * inv_h
    var = jnp.maximum(mean_sq - mean * mean, 0.0)
    y = (hb - mean) * jax.lax.rsqrt(var + eps) * gamma_ref[...] + beta_ref[...]
    out_ref[...] = y.astype(out_ref.dtype)


# ----------------------------------------------------------------------------
# One LSTM(num_layers=1) + LayerNorm layer (time-major, padded shapes).
# ----------------------------------------------------------------------------
def lstm_layernorm_layer(x_tm, layer, *, eps=1e-5, tt=16,
                         out_dtype=jnp.float32):
    """x_tm: (T, B, Dp) with T % tt == 0, B % 8 == 0, Dp == wih_t.shape[0].
    Returns (T, B, Hp) in `out_dtype` (padded hidden columns are zero)."""
    T, B, Dp = x_tm.shape
    Hp = layer["hidden_padded"]
    four_h = 4 * Hp
    assert T % tt == 0 and B % _SUBLANE == 0
    assert Dp == layer["wih_t"].shape[0]
    n_blocks = T // tt

    kernel = functools.partial(_lstm_ln_kernel, hidden=layer["hidden"],
                               hidden_padded=Hp, eps=eps)

    # Grid-invariant operands: one VMEM buffer is enough (no double-buffer).
    def const_spec(shape):
        return pl.BlockSpec(shape, lambda t: (0, 0),
                            pipeline_mode=pl.Buffered(1))

    # Explicit scoped-VMEM budget: single-buffered weights + double-buffered
    # x/out blocks + gx / h-block scratch + state, with 2x headroom.
    def bpe(dt):
        return jnp.dtype(dt).itemsize

    est = (Dp * four_h * bpe(layer["wih_t"].dtype)         # W_ih^T
           + Hp * four_h * bpe(layer["whh_t"].dtype)        # W_hh^T
           + 2 * tt * B * Dp * bpe(x_tm.dtype)              # x blocks (x2)
           + 2 * tt * B * Hp * bpe(out_dtype)               # out blocks (x2)
           + tt * B * four_h * 4                            # gx scratch
           + tt * B * Hp * 4                                # raw-h scratch
           + 2 * B * Hp * 4                                 # h/c state
           + 6 * four_h * 4)                                # bias/gamma/beta
    vmem_limit = int(min(100 * 2 ** 20, max(32 * 2 ** 20, 2 * est)))

    return pl.pallas_call(
        kernel,
        out_shape=jax.ShapeDtypeStruct((T, B, Hp), out_dtype),
        grid_spec=pltpu.PrefetchScalarGridSpec(
            num_scalar_prefetch=0,
            grid=(n_blocks,),
            in_specs=[
                pl.BlockSpec((tt, B, Dp), lambda t: (t, 0, 0)),   # x block
                const_spec((Dp, four_h)),                          # W_ih^T
                const_spec((Hp, four_h)),                          # W_hh^T
                const_spec((1, four_h)),                           # bias
                const_spec((1, Hp)),                               # gamma
                const_spec((1, Hp)),                               # beta
            ],
            out_specs=pl.BlockSpec((tt, B, Hp), lambda t: (t, 0, 0)),
            scratch_shapes=[
                pltpu.VMEM((B, Hp), jnp.float32),          # h state (persists)
                pltpu.VMEM((B, Hp), jnp.float32),          # c state (persists)
                pltpu.VMEM((tt, B, four_h), jnp.float32),  # gx = x@Wih^T + b
                pltpu.VMEM((tt, B, Hp), jnp.float32),      # raw h block
            ],
        ),
        compiler_params=pltpu.CompilerParams(
            dimension_semantics=("arbitrary",),            # serial recurrence
            vmem_limit_bytes=vmem_limit),
    )(x_tm, layer["wih_t"], layer["whh_t"], layer["bias"],
      layer["gamma"], layer["beta"])


# ----------------------------------------------------------------------------
# Parameter packing (done ONCE, not per forward call).
# ----------------------------------------------------------------------------
def prepare_params(params, *, input_matmul_dtype=jnp.float32,
                   recurrent_matmul_dtype=jnp.float32):
    """Pack PyTorch-shaped params into the padded, pre-transposed layout.

    H / D_in are padded to multiples of 128 (lane-dense gate slices + stores).
    W_ih is cast to `input_matmul_dtype` (bf16 recommended on all TPU gens);
    W_hh / recurrent state stay in `recurrent_matmul_dtype` (f32 by default so
    error does not compound over the sequence).
    """
    packed = []
    prev_hp = None
    for i, p in enumerate(params):
        w_ih = jnp.asarray(p["w_ih"], jnp.float32)       # (4H, D_in)
        w_hh = jnp.asarray(p["w_hh"], jnp.float32)       # (4H, H)
        H = w_hh.shape[1]
        d_in = w_ih.shape[1]
        Hp = _round_up(H, _LANE)
        Dp = _round_up(d_in, _LANE) if i == 0 else prev_hp

        def pad_gates(w, d, dp):                          # (4H, d) -> (4Hp, dp)
            w = w.reshape(4, H, d)
            w = jnp.pad(w, ((0, 0), (0, Hp - H), (0, dp - d)))
            return w.reshape(4 * Hp, dp)

        wih_t = pad_gates(w_ih, d_in, Dp).T.astype(input_matmul_dtype)
        whh_t = pad_gates(w_hh, H, Hp).T.astype(recurrent_matmul_dtype)

        bias = (jnp.asarray(p["b_ih"], jnp.float32)
                + jnp.asarray(p["b_hh"], jnp.float32)).reshape(4, H)
        bias = jnp.pad(bias, ((0, 0), (0, Hp - H))).reshape(1, 4 * Hp)
        gamma = jnp.pad(jnp.asarray(p["gamma"], jnp.float32),
                        (0, Hp - H)).reshape(1, Hp)
        beta = jnp.pad(jnp.asarray(p["beta"], jnp.float32),
                       (0, Hp - H)).reshape(1, Hp)

        packed.append({
            "wih_t": wih_t, "whh_t": whh_t, "bias": bias,
            "gamma": gamma, "beta": beta,
            "hidden": H, "hidden_padded": Hp, "d_in_padded": Dp,
            "act_dtype": jnp.dtype(input_matmul_dtype),
        })
        prev_hp = Hp
    return packed


# ----------------------------------------------------------------------------
# Full module: LayerNormLSTM forward (batch_first, h0 = c0 = 0).
# ----------------------------------------------------------------------------
def layer_norm_lstm_forward(x, packed_params, *, eps=1e-5, tt=16):
    """x: (B, T, input_size) -> (B, T, hidden_size), f32, batch_first."""
    x = jnp.asarray(x, jnp.float32)
    B, T, D = x.shape
    n_layers = len(packed_params)

    # bf16 activations pack 16 rows per vreg -> pad batch to 16 in that case.
    bf16_acts = any(p["act_dtype"] == jnp.dtype(jnp.bfloat16)
                    for p in packed_params)
    sub = 16 if bf16_acts else _SUBLANE
    b_pad = (-B) % sub
    t_pad = (-T) % tt
    d_pad = packed_params[0]["d_in_padded"] - D

    out = jnp.transpose(x, (1, 0, 2))                     # time-major
    out = jnp.pad(out, ((0, t_pad), (0, b_pad), (0, d_pad)))

    for li, p in enumerate(packed_params):
        # Inter-layer activations in the input-matmul dtype (the next layer
        # casts x to that dtype anyway); the final layer always emits f32.
        out_dtype = jnp.float32 if li == n_layers - 1 else p["act_dtype"]
        out = lstm_layernorm_layer(out, p, eps=eps, tt=tt, out_dtype=out_dtype)

    out = out[:T, :B, :packed_params[-1]["hidden"]]
    return jnp.transpose(out, (1, 0, 2))                  # batch-first


def init_params(key, input_size, hidden_size, num_layers):
    """Deterministic synthetic parameters with PyTorch shapes."""
    params = []
    for i in range(num_layers):
        d_in = input_size if i == 0 else hidden_size
        key, k1, k2, k3, k4 = jax.random.split(key, 5)
        scale = 1.0 / np.sqrt(hidden_size)
        params.append({
            "w_ih": jax.random.uniform(k1, (4 * hidden_size, d_in),
                                       jnp.float32, -scale, scale),
            "w_hh": jax.random.uniform(k2, (4 * hidden_size, hidden_size),
                                       jnp.float32, -scale, scale),
            "b_ih": jax.random.uniform(k3, (4 * hidden_size,),
                                       jnp.float32, -scale, scale),
            "b_hh": jax.random.uniform(k4, (4 * hidden_size,),
                                       jnp.float32, -scale, scale),
            "gamma": jnp.ones((hidden_size,), jnp.float32),
            "beta": jnp.zeros((hidden_size,), jnp.float32),
        })
    return params


# ----------------------------------------------------------------------------
# Pure-JAX reference (correctness check only).
# ----------------------------------------------------------------------------
def _reference_forward(x, params, eps=1e-5):
    hi = jax.lax.Precision.HIGHEST
    out = jnp.asarray(x, jnp.float32)
    B = out.shape[0]
    for p in params:
        H = p["w_hh"].shape[1]
        w_ih_t, w_hh_t = p["w_ih"].T, p["w_hh"].T
        bias = p["b_ih"] + p["b_hh"]

        def step(carry, x_t, w_ih_t=w_ih_t, w_hh_t=w_hh_t, bias=bias, H=H):
            h, c = carry
            gates = (jnp.dot(x_t, w_ih_t, precision=hi)
                     + jnp.dot(h, w_hh_t, precision=hi) + bias)
            i = jax.nn.sigmoid(gates[:, 0 * H:1 * H])
            f = jax.nn.sigmoid(gates[:, 1 * H:2 * H])
            g = jnp.tanh(gates[:, 2 * H:3 * H])
            o = jax.nn.sigmoid(gates[:, 3 * H:4 * H])
            c = f * c + i * g
            h = o * jnp.tanh(c)
            return (h, c), h

        h0 = jnp.zeros((B, H), jnp.float32)
        c0 = jnp.zeros((B, H), jnp.float32)
        _, hs = jax.lax.scan(step, (h0, c0), jnp.transpose(out, (1, 0, 2)))
        hs = jnp.transpose(hs, (1, 0, 2))
        mean = jnp.mean(hs, axis=-1, keepdims=True)
        var = jnp.mean((hs - mean) ** 2, axis=-1, keepdims=True)
        out = (hs - mean) * jax.lax.rsqrt(var + eps) * p["gamma"] + p["beta"]
    return out


if __name__ == "__main__":
    batch, seq, input_size, hidden_size, num_layers = 2, 8, 16, 32, 2

    key = jax.random.PRNGKey(0)
    key, kx = jax.random.split(key)
    x = jax.random.normal(kx, (batch, seq, input_size), jnp.float32)
    params = init_params(key, input_size, hidden_size, num_layers)

    ref = jax.block_until_ready(_reference_forward(x, params))

    # f32 path; tt=4 -> grid=(2,), exercising h/c persistence across blocks.
    packed_f32 = prepare_params(params)
    out = jax.block_until_ready(layer_norm_lstm_forward(x, packed_f32, tt=4))
    assert out.shape == (batch, seq, hidden_size)
    np.testing.assert_allclose(np.asarray(out), np.asarray(ref),
                               rtol=1e-3, atol=1e-3)

    # bf16 input-projection + bf16 inter-layer activations, f32 recurrence.
    packed_bf16 = prepare_params(params, input_matmul_dtype=jnp.bfloat16)
    out_bf16 = jax.block_until_ready(layer_norm_lstm_forward(x, packed_bf16))
    np.testing.assert_allclose(np.asarray(out_bf16), np.asarray(ref),
                               rtol=1e-1, atol=1e-1)

    print("KERNEL_OK")
</pallas_src>

<mosaic_0001>
module attributes {stable_mosaic.version = 11 : i64} {
  func.func @_lstm_ln_kernel(%arg0: i32, %arg1: memref<4x8x128xf32, #tpu.memory_space<vmem>>, %arg2: memref<128x512xf32, #tpu.memory_space<vmem>>, %arg3: memref<128x512xf32, #tpu.memory_space<vmem>>, %arg4: memref<1x512xf32, #tpu.memory_space<vmem>>, %arg5: memref<1x128xf32, #tpu.memory_space<vmem>>, %arg6: memref<1x128xf32, #tpu.memory_space<vmem>>, %arg7: memref<4x8x128xf32, #tpu.memory_space<vmem>>, %arg8: memref<8x128xf32, #tpu.memory_space<vmem>>, %arg9: memref<8x128xf32, #tpu.memory_space<vmem>>, %arg10: memref<4x8x512xf32, #tpu.memory_space<vmem>>, %arg11: memref<4x8x128xf32, #tpu.memory_space<vmem>>) attributes {dimension_semantics = [#tpu.dimension_semantics<arbitrary>], iteration_bounds = array<i64: 2>, scalar_prefetch = 0 : i64, scratch_operands = 4 : i64, tpu.core_type = #tpu.core_type<tc>, window_params = [{transform_indices = @transform_0, window_bounds = array<i64: 4, 8, 128>}, {pipeline_mode = #tpu.pipeline_mode<synchronous>, transform_indices = @transform_1, window_bounds = array<i64: 128, 512>}, {pipeline_mode = #tpu.pipeline_mode<synchronous>, transform_indices = @transform_2, window_bounds = array<i64: 128, 512>}, {pipeline_mode = #tpu.pipeline_mode<synchronous>, transform_indices = @transform_3, window_bounds = array<i64: 1, 512>}, {pipeline_mode = #tpu.pipeline_mode<synchronous>, transform_indices = @transform_4, window_bounds = array<i64: 1, 128>}, {pipeline_mode = #tpu.pipeline_mode<synchronous>, transform_indices = @transform_5, window_bounds = array<i64: 1, 128>}, {transform_indices = @transform_6, window_bounds = array<i64: 4, 8, 128>}]} {
    %c0_i32 = arith.constant 0 : i32
    %0 = arith.cmpi eq, %arg0, %c0_i32 : i32
    %1 = arith.extui %0 : i1 to i32
    %c0_i32_0 = arith.constant 0 : i32
    %2 = arith.cmpi ne, %1, %c0_i32_0 : i32
    scf.if %2 {
      %cst_69 = arith.constant 0.000000e+00 : f32
      %183 = vector.broadcast %cst_69 : f32 to vector<8x128xf32>
      %c0_70 = arith.constant 0 : index
      %c0_71 = arith.constant 0 : index
      %184 = vector.load %arg8[%c0_70, %c0_71] : memref<8x128xf32, #tpu.memory_space<vmem>>, vector<8x128xf32>
      tpu.vector_store %arg8[%c0_70, %c0_71], %183 {strides = array<i32>} : memref<8x128xf32, #tpu.memory_space<vmem>>, vector<8x128xf32>,
      %cst_72 = arith.constant 0.000000e+00 : f32
      %185 = vector.broadcast %cst_72 : f32 to vector<8x128xf32>
      %c0_73 = arith.constant 0 : index
      %c0_74 = arith.constant 0 : index
      %186 = vector.load %arg9[%c0_73, %c0_74] : memref<8x128xf32, #tpu.memory_space<vmem>>, vector<8x128xf32>
      tpu.vector_store %arg9[%c0_73, %c0_74], %185 {strides = array<i32>} : memref<8x128xf32, #tpu.memory_space<vmem>>, vector<8x128xf32>,
    } else {
    }
    %c0 = arith.constant 0 : index
    %c0_1 = arith.constant 0 : index
    %c0_2 = arith.constant 0 : index
    %3 = vector.load %arg1[%c0, %c0_1, %c0_2] : memref<4x8x128xf32, #tpu.memory_space<vmem>>, vector<4x8x128xf32>
    %4 = vector.shape_cast %3 : vector<4x8x128xf32> to vector<32x128xf32>
    %c0_3 = arith.constant 0 : index
    %c0_4 = arith.constant 0 : index
    %5 = vector.load %arg2[%c0_3, %c0_4] : memref<128x512xf32, #tpu.memory_space<vmem>>, vector<128x512xf32>
    %cst = arith.constant dense<0.000000e+00> : vector<32x512xf32>
    %6 = tpu.matmul %4, %5, %cst {dimension_numbers = #tpu.dot_dimension_numbers<[1], [0], [0], [1], [0, 0, 1, 1], [], []>} : vector<32x128xf32>, vector<128x512xf32>, vector<32x512xf32> -> vector<32x512xf32>
    %c0_5 = arith.constant 0 : index
    %c0_6 = arith.constant 0 : index
    %7 = vector.load %arg4[%c0_5, %c0_6] : memref<1x512xf32, #tpu.memory_space<vmem>>, vector<1x512xf32>
    %8 = vector.broadcast %7 : vector<1x512xf32> to vector<32x512xf32>
    %9 = arith.addf %6, %8 : vector<32x512xf32>
    %10 = vector.shape_cast %9 : vector<32x512xf32> to vector<4x8x512xf32>
    %c0_7 = arith.constant 0 : index
    %c0_8 = arith.constant 0 : index
    %c0_9 = arith.constant 0 : index
    %11 = vector.load %arg10[%c0_7, %c0_8, %c0_9] : memref<4x8x512xf32, #tpu.memory_space<vmem>>, vector<4x8x512xf32>
    tpu.vector_store %arg10[%c0_7, %c0_8, %c0_9], %10 {strides = array<i32>} : memref<4x8x512xf32, #tpu.memory_space<vmem>>, vector<4x8x512xf32>,
    %c0_10 = arith.constant 0 : index
    %c0_11 = arith.constant 0 : index
    %12 = vector.load %arg3[%c0_10, %c0_11] : memref<128x512xf32, #tpu.memory_space<vmem>>, vector<128x512xf32>
    %c0_12 = arith.constant 0 : index
    %c0_13 = arith.constant 0 : index
    %13 = vector.load %arg8[%c0_12, %c0_13] : memref<8x128xf32, #tpu.memory_space<vmem>>, vector<8x128xf32>
    %c0_14 = arith.constant 0 : index
    %c0_15 = arith.constant 0 : index
    %14 = vector.load %arg9[%c0_14, %c0_15] : memref<8x128xf32, #tpu.memory_space<vmem>>, vector<8x128xf32>
    %c0_i32_16 = arith.constant 0 : i32
    %15 = arith.index_cast %c0_i32_16 : i32 to index
    %c0_17 = arith.constant 0 : index
    %c0_18 = arith.constant 0 : index
    %16 = vector.load %arg10[%15, %c0_17, %c0_18] : memref<4x8x512xf32, #tpu.memory_space<vmem>>, vector<1x8x512xf32>
    %17 = vector.shape_cast %16 : vector<1x8x512xf32> to vector<8x512xf32>
    %cst_19 = arith.constant dense<0.000000e+00> : vector<8x512xf32>
    %18 = tpu.matmul %13, %12, %cst_19 {dimension_numbers = #tpu.dot_dimension_numbers<[1], [0], [0], [1], [0, 0, 1, 1], [], []>} : vector<8x128xf32>, vector<128x512xf32>, vector<8x512xf32> -> vector<8x512xf32>
    %19 = arith.addf %17, %18 : vector<8x512xf32>
    %20 = vector.extract_strided_slice %19 {offsets = [0, 0], sizes = [8, 128], strides = [1, 1]} : vector<8x512xf32> to vector<8x128xf32>
    %21 = arith.negf %20 : vector<8x128xf32>
    %22 = math.exp %21 : vector<8x128xf32>
    %cst_20 = arith.constant 1.000000e+00 : f32
    %23 = vector.broadcast %cst_20 : f32 to vector<8x128xf32>
    %24 = arith.addf %23, %22 : vector<8x128xf32>
    %25 = arith.divf %23, %24 : vector<8x128xf32>
    %26 = vector.extract_strided_slice %19 {offsets = [0, 128], sizes = [8, 128], strides = [1, 1]} : vector<8x512xf32> to vector<8x128xf32>
    %27 = arith.negf %26 : vector<8x128xf32>
    %28 = math.exp %27 : vector<8x128xf32>
    %cst_21 = arith.constant 1.000000e+00 : f32
    %29 = vector.broadcast %cst_21 : f32 to vector<8x128xf32>
    %30 = arith.addf %29, %28 : vector<8x128xf32>
    %31 = arith.divf %29, %30 : vector<8x128xf32>
    %32 = vector.extract_strided_slice %19 {offsets = [0, 256], sizes = [8, 128], strides = [1, 1]} : vector<8x512xf32> to vector<8x128xf32>
    %33 = math.tanh %32 : vector<8x128xf32>
    %34 = vector.extract_strided_slice %19 {offsets = [0, 384], sizes = [8, 128], strides = [1, 1]} : vector<8x512xf32> to vector<8x128xf32>
    %35 = arith.negf %34 : vector<8x128xf32>
    %36 = math.exp %35 : vector<8x128xf32>
    %cst_22 = arith.constant 1.000000e+00 : f32
    %37 = vector.broadcast %cst_22 : f32 to vector<8x128xf32>
    %38 = arith.addf %37, %36 : vector<8x128xf32>
    %39 = arith.divf %37, %38 : vector<8x128xf32>
    %40 = arith.mulf %31, %14 : vector<8x128xf32>
    %41 = arith.mulf %25, %33 : vector<8x128xf32>
    %42 = arith.addf %40, %41 : vector<8x128xf32>
    %43 = math.tanh %42 : vector<8x128xf32>
    %44 = arith.mulf %39, %43 : vector<8x128xf32>
    %45 = arith.index_cast %c0_i32_16 : i32 to index
    %c0_23 = arith.constant 0 : index
    %c0_24 = arith.constant 0 : index
    %46 = vector.load %arg11[%45, %c0_23, %c0_24] : memref<4x8x128xf32, #tpu.memory_space<vmem>>, vector<1x8x128xf32>
    %47 = vector.shape_cast %46 : vector<1x8x128xf32> to vector<8x128xf32>
    %48 = vector.shape_cast %44 : vector<8x128xf32> to vector<1x8x128xf32>
    tpu.vector_store %arg11[%45, %c0_23, %c0_24], %48 {strides = array<i32>} : memref<4x8x128xf32, #tpu.memory_space<vmem>>, vector<1x8x128xf32>,
    %c1_i32 = arith.constant 1 : i32
    %49 = arith.index_cast %c1_i32 : i32 to index
    %c0_25 = arith.constant 0 : index
    %c0_26 = arith.constant 0 : index
    %50 = vector.load %arg10[%49, %c0_25, %c0_26] : memref<4x8x512xf32, #tpu.memory_space<vmem>>, vector<1x8x512xf32>
    %51 = vector.shape_cast %50 : vector<1x8x512xf32> to vector<8x512xf32>
    %cst_27 = arith.constant dense<0.000000e+00> : vector<8x512xf32>
    %52 = tpu.matmul %44, %12, %cst_27 {dimension_numbers = #tpu.dot_dimension_numbers<[1], [0], [0], [1], [0, 0, 1, 1], [], []>} : vector<8x128xf32>, vector<128x512xf32>, vector<8x512xf32> -> vector<8x512xf32>
    %53 = arith.addf %51, %52 : vector<8x512xf32>
    %54 = vector.extract_strided_slice %53 {offsets = [0, 0], sizes = [8, 128], strides = [1, 1]} : vector<8x512xf32> to vector<8x128xf32>
    %55 = arith.negf %54 : vector<8x128xf32>
    %56 = math.exp %55 : vector<8x128xf32>
    %cst_28 = arith.constant 1.000000e+00 : f32
    %57 = vector.broadcast %cst_28 : f32 to vector<8x128xf32>
    %58 = arith.addf %57, %56 : vector<8x128xf32>
    %59 = arith.divf %57, %58 : vector<8x128xf32>
    %60 = vector.extract_strided_slice %53 {offsets = [0, 128], sizes = [8, 128], strides = [1, 1]} : vector<8x512xf32> to vector<8x128xf32>
    %61 = arith.negf %60 : vector<8x128xf32>
    %62 = math.exp %61 : vector<8x128xf32>
    %cst_29 = arith.constant 1.000000e+00 : f32
    %63 = vector.broadcast %cst_29 : f32 to vector<8x128xf32>
    %64 = arith.addf %63, %62 : vector<8x128xf32>
    %65 = arith.divf %63, %64 : vector<8x128xf32>
    %66 = vector.extract_strided_slice %53 {offsets = [0, 256], sizes = [8, 128], strides = [1, 1]} : vector<8x512xf32> to vector<8x128xf32>
    %67 = math.tanh %66 : vector<8x128xf32>
    %68 = vector.extract_strided_slice %53 {offsets = [0, 384], sizes = [8, 128], strides = [1, 1]} : vector<8x512xf32> to vector<8x128xf32>
    %69 = arith.negf %68 : vector<8x128xf32>
    %70 = math.exp %69 : vector<8x128xf32>
    %cst_30 = arith.constant 1.000000e+00 : f32
    %71 = vector.broadcast %cst_30 : f32 to vector<8x128xf32>
    %72 = arith.addf %71, %70 : vector<8x128xf32>
    %73 = arith.divf %71, %72 : vector<8x128xf32>
    %74 = arith.mulf %65, %42 : vector<8x128xf32>
    %75 = arith.mulf %59, %67 : vector<8x128xf32>
    %76 = arith.addf %74, %75 : vector<8x128xf32>
    %77 = math.tanh %76 : vector<8x128xf32>
    %78 = arith.mulf %73, %77 : vector<8x128xf32>
    %79 = arith.index_cast %c1_i32 : i32 to index
    %c0_31 = arith.constant 0 : index
    %c0_32 = arith.constant 0 : index
    %80 = vector.load %arg11[%79, %c0_31, %c0_32] : memref<4x8x128xf32, #tpu.memory_space<vmem>>, vector<1x8x128xf32>
    %81 = vector.shape_cast %80 : vector<1x8x128xf32> to vector<8x128xf32>
    %82 = vector.shape_cast %78 : vector<8x128xf32> to vector<1x8x128xf32>
    tpu.vector_store %arg11[%79, %c0_31, %c0_32], %82 {strides = array<i32>} : memref<4x8x128xf32, #tpu.memory_space<vmem>>, vector<1x8x128xf32>,
    %c2_i32 = arith.constant 2 : i32
    %83 = arith.index_cast %c2_i32 : i32 to index
    %c0_33 = arith.constant 0 : index
    %c0_34 = arith.constant 0 : index
    %84 = vector.load %arg10[%83, %c0_33, %c0_34] : memref<4x8x512xf32, #tpu.memory_space<vmem>>, vector<1x8x512xf32>
    %85 = vector.shape_cast %84 : vector<1x8x512xf32> to vector<8x512xf32>
    %cst_35 = arith.constant dense<0.000000e+00> : vector<8x512xf32>
    %86 = tpu.matmul %78, %12, %cst_35 {dimension_numbers = #tpu.dot_dimension_numbers<[1], [0], [0], [1], [0, 0, 1, 1], [], []>} : vector<8x128xf32>, vector<128x512xf32>, vector<8x512xf32> -> vector<8x512xf32>
    %87 = arith.addf %85, %86 : vector<8x512xf32>
    %88 = vector.extract_strided_slice %87 {offsets = [0, 0], sizes = [8, 128], strides = [1, 1]} : vector<8x512xf32> to vector<8x128xf32>
    %89 = arith.negf %88 : vector<8x128xf32>
    %90 = math.exp %89 : vector<8x128xf32>
    %cst_36 = arith.constant 1.000000e+00 : f32
    %91 = vector.broadcast %cst_36 : f32 to vector<8x128xf32>
    %92 = arith.addf %91, %90 : vector<8x128xf32>
    %93 = arith.divf %91, %92 : vector<8x128xf32>
    %94 = vector.extract_strided_slice %87 {offsets = [0, 128], sizes = [8, 128], strides = [1, 1]} : vector<8x512xf32> to vector<8x128xf32>
    %95 = arith.negf %94 : vector<8x128xf32>
    %96 = math.exp %95 : vector<8x128xf32>
    %cst_37 = arith.constant 1.000000e+00 : f32
    %97 = vector.broadcast %cst_37 : f32 to vector<8x128xf32>
    %98 = arith.addf %97, %96 : vector<8x128xf32>
    %99 = arith.divf %97, %98 : vector<8x128xf32>
    %100 = vector.extract_strided_slice %87 {offsets = [0, 256], sizes = [8, 128], strides = [1, 1]} : vector<8x512xf32> to vector<8x128xf32>
    %101 = math.tanh %100 : vector<8x128xf32>
    %102 = vector.extract_strided_slice %87 {offsets = [0, 384], sizes = [8, 128], strides = [1, 1]} : vector<8x512xf32> to vector<8x128xf32>
    %103 = arith.negf %102 : vector<8x128xf32>
    %104 = math.exp %103 : vector<8x128xf32>
    %cst_38 = arith.constant 1.000000e+00 : f32
    %105 = vector.broadcast %cst_38 : f32 to vector<8x128xf32>
    %106 = arith.addf %105, %104 : vector<8x128xf32>
    %107 = arith.divf %105, %106 : vector<8x128xf32>
    %108 = arith.mulf %99, %76 : vector<8x128xf32>
    %109 = arith.mulf %93, %101 : vector<8x128xf32>
    %110 = arith.addf %108, %109 : vector<8x128xf32>
    %111 = math.tanh %110 : vector<8x128xf32>
    %112 = arith.mulf %107, %111 : vector<8x128xf32>
    %113 = arith.index_cast %c2_i32 : i32 to index
    %c0_39 = arith.constant 0 : index
    %c0_40 = arith.constant 0 : index
    %114 = vector.load %arg11[%113, %c0_39, %c0_40] : memref<4x8x128xf32, #tpu.memory_space<vmem>>, vector<1x8x128xf32>
    %115 = vector.shape_cast %114 : vector<1x8x128xf32> to vector<8x128xf32>
    %116 = vector.shape_cast %112 : vector<8x128xf32> to vector<1x8x128xf32>
    tpu.vector_store %arg11[%113, %c0_39, %c0_40], %116 {strides = array<i32>} : memref<4x8x128xf32, #tpu.memory_space<vmem>>, vector<1x8x128xf32>,
    %c3_i32 = arith.constant 3 : i32
    %117 = arith.index_cast %c3_i32 : i32 to index
    %c0_41 = arith.constant 0 : index
    %c0_42 = arith.constant 0 : index
    %118 = vector.load %arg10[%117, %c0_41, %c0_42] : memref<4x8x512xf32, #tpu.memory_space<vmem>>, vector<1x8x512xf32>
    %119 = vector.shape_cast %118 : vector<1x8x512xf32> to vector<8x512xf32>
    %cst_43 = arith.constant dense<0.000000e+00> : vector<8x512xf32>
    %120 = tpu.matmul %112, %12, %cst_43 {dimension_numbers = #tpu.dot_dimension_numbers<[1], [0], [0], [1], [0, 0, 1, 1], [], []>} : vector<8x128xf32>, vector<128x512xf32>, vector<8x512xf32> -> vector<8x512xf32>
    %121 = arith.addf %119, %120 : vector<8x512xf32>
    %122 = vector.extract_strided_slice %121 {offsets = [0, 0], sizes = [8, 128], strides = [1, 1]} : vector<8x512xf32> to vector<8x128xf32>
    %123 = arith.negf %122 : vector<8x128xf32>
    %124 = math.exp %123 : vector<8x128xf32>
    %cst_44 = arith.constant 1.000000e+00 : f32
    %125 = vector.broadcast %cst_44 : f32 to vector<8x128xf32>
    %126 = arith.addf %125, %124 : vector<8x128xf32>
    %127 = arith.divf %125, %126 : vector<8x128xf32>
    %128 = vector.extract_strided_slice %121 {offsets = [0, 128], sizes = [8, 128], strides = [1, 1]} : vector<8x512xf32> to vector<8x128xf32>
    %129 = arith.negf %128 : vector<8x128xf32>
    %130 = math.exp %129 : vector<8x128xf32>
    %cst_45 = arith.constant 1.000000e+00 : f32
    %131 = vector.broadcast %cst_45 : f32 to vector<8x128xf32>
    %132 = arith.addf %131, %130 : vector<8x128xf32>
    %133 = arith.divf %131, %132 : vector<8x128xf32>
    %134 = vector.extract_strided_slice %121 {offsets = [0, 256], sizes = [8, 128], strides = [1, 1]} : vector<8x512xf32> to vector<8x128xf32>
    %135 = math.tanh %134 : vector<8x128xf32>
    %136 = vector.extract_strided_slice %121 {offsets = [0, 384], sizes = [8, 128], strides = [1, 1]} : vector<8x512xf32> to vector<8x128xf32>
    %137 = arith.negf %136 : vector<8x128xf32>
    %138 = math.exp %137 : vector<8x128xf32>
    %cst_46 = arith.constant 1.000000e+00 : f32
    %139 = vector.broadcast %cst_46 : f32 to vector<8x128xf32>
    %140 = arith.addf %139, %138 : vector<8x128xf32>
    %141 = arith.divf %139, %140 : vector<8x128xf32>
    %142 = arith.mulf %133, %110 : vector<8x128xf32>
    %143 = arith.mulf %127, %135 : vector<8x128xf32>
    %144 = arith.addf %142, %143 : vector<8x128xf32>
    %145 = math.tanh %144 : vector<8x128xf32>
    %146 = arith.mulf %141, %145 : vector<8x128xf32>
    %147 = arith.index_cast %c3_i32 : i32 to index
    %c0_47 = arith.constant 0 : index
    %c0_48 = arith.constant 0 : index
    %148 = vector.load %arg11[%147, %c0_47, %c0_48] : memref<4x8x128xf32, #tpu.memory_space<vmem>>, vector<1x8x128xf32>
    %149 = vector.shape_cast %148 : vector<1x8x128xf32> to vector<8x128xf32>
    %150 = vector.shape_cast %146 : vector<8x128xf32> to vector<1x8x128xf32>
    tpu.vector_store %arg11[%147, %c0_47, %c0_48], %150 {strides = array<i32>} : memref<4x8x128xf32, #tpu.memory_space<vmem>>, vector<1x8x128xf32>,
    %c4_i32 = arith.constant 4 : i32
    %c0_49 = arith.constant 0 : index
    %c0_50 = arith.constant 0 : index
    %151 = vector.load %arg8[%c0_49, %c0_50] : memref<8x128xf32, #tpu.memory_space<vmem>>, vector<8x128xf32>
    tpu.vector_store %arg8[%c0_49, %c0_50], %146 {strides = array<i32>} : memref<8x128xf32, #tpu.memory_space<vmem>>, vector<8x128xf32>,
    %c0_51 = arith.constant 0 : index
    %c0_52 = arith.constant 0 : index
    %152 = vector.load %arg9[%c0_51, %c0_52] : memref<8x128xf32, #tpu.memory_space<vmem>>, vector<8x128xf32>
    tpu.vector_store %arg9[%c0_51, %c0_52], %144 {strides = array<i32>} : memref<8x128xf32, #tpu.memory_space<vmem>>, vector<8x128xf32>,
    %c0_53 = arith.constant 0 : index
    %c0_54 = arith.constant 0 : index
    %c0_55 = arith.constant 0 : index
    %153 = vector.load %arg11[%c0_53, %c0_54, %c0_55] : memref<4x8x128xf32, #tpu.memory_space<vmem>>, vector<4x8x128xf32>
    %cst_56 = arith.constant dense<0.000000e+00> : vector<4x8xf32>
    %154 = vector.multi_reduction <add>, %153, %cst_56 [2] : vector<4x8x128xf32> to vector<4x8xf32>
    %155 = vector.shape_cast %154 : vector<4x8xf32> to vector<4x8x1xf32>
    %cst_57 = arith.constant 3.125000e-02 : f32
    %156 = vector.broadcast %cst_57 : f32 to vector<4x8x1xf32>
    %157 = arith.mulf %155, %156 : vector<4x8x1xf32>
    %158 = arith.mulf %153, %153 : vector<4x8x128xf32>
    %cst_58 = arith.constant dense<0.000000e+00> : vector<4x8xf32>
    %159 = vector.multi_reduction <add>, %158, %cst_58 [2] : vector<4x8x128xf32> to vector<4x8xf32>
    %160 = vector.shape_cast %159 : vector<4x8xf32> to vector<4x8x1xf32>
    %cst_59 = arith.constant 3.125000e-02 : f32
    %161 = vector.broadcast %cst_59 : f32 to vector<4x8x1xf32>
    %162 = arith.mulf %160, %161 : vector<4x8x1xf32>
    %163 = arith.mulf %157, %157 : vector<4x8x1xf32>
    %164 = arith.subf %162, %163 : vector<4x8x1xf32>
    %cst_60 = arith.constant 0.000000e+00 : f32
    %165 = vector.broadcast %cst_60 : f32 to vector<4x8x1xf32>
    %166 = arith.maximumf %164, %165 : vector<4x8x1xf32>
    %167 = vector.broadcast %157 : vector<4x8x1xf32> to vector<4x8x128xf32>
    %168 = arith.subf %153, %167 : vector<4x8x128xf32>
    %cst_61 = arith.constant 9.99999974E-6 : f32
    %169 = vector.broadcast %cst_61 : f32 to vector<4x8x1xf32>
    %170 = arith.addf %166, %169 : vector<4x8x1xf32>
    %171 = math.rsqrt %170 : vector<4x8x1xf32>
    %172 = vector.broadcast %171 : vector<4x8x1xf32> to vector<4x8x128xf32>
    %173 = arith.mulf %168, %172 : vector<4x8x128xf32>
    %c0_62 = arith.constant 0 : index
    %c0_63 = arith.constant 0 : index
    %174 = vector.load %arg5[%c0_62, %c0_63] : memref<1x128xf32, #tpu.memory_space<vmem>>, vector<1x128xf32>
    %175 = vector.shape_cast %174 : vector<1x128xf32> to vector<1x1x128xf32>
    %176 = vector.broadcast %175 : vector<1x1x128xf32> to vector<4x8x128xf32>
    %177 = arith.mulf %173, %176 : vector<4x8x128xf32>
    %c0_64 = arith.constant 0 : index
    %c0_65 = arith.constant 0 : index
    %178 = vector.load %arg6[%c0_64, %c0_65] : memref<1x128xf32, #tpu.memory_space<vmem>>, vector<1x128xf32>
    %179 = vector.shape_cast %178 : vector<1x128xf32> to vector<1x1x128xf32>
    %180 = vector.broadcast %179 : vector<1x1x128xf32> to vector<4x8x128xf32>
    %181 = arith.addf %177, %180 : vector<4x8x128xf32>
    %c0_66 = arith.constant 0 : index
    %c0_67 = arith.constant 0 : index
    %c0_68 = arith.constant 0 : index
    %182 = vector.load %arg7[%c0_66, %c0_67, %c0_68] : memref<4x8x128xf32, #tpu.memory_space<vmem>>, vector<4x8x128xf32>
    tpu.vector_store %arg7[%c0_66, %c0_67, %c0_68], %181 {strides = array<i32>} : memref<4x8x128xf32, #tpu.memory_space<vmem>>, vector<4x8x128xf32>,
    return
  }
  func.func @transform_0(%arg0: i32) -> (i32, i32, i32) {
    %c0_i32 = arith.constant 0 : i32
    %c0_i32_0 = arith.constant 0 : i32
    %c0_i32_1 = arith.constant 0 : i32
    return %arg0, %c0_i32, %c0_i32_0 : i32, i32, i32
  }
  func.func @transform_1(%arg0: i32) -> (i32, i32) {
    %c0_i32 = arith.constant 0 : i32
    %c0_i32_0 = arith.constant 0 : i32
    %c0_i32_1 = arith.constant 0 : i32
    return %c0_i32, %c0_i32_0 : i32, i32
  }
  func.func @transform_2(%arg0: i32) -> (i32, i32) {
    %c0_i32 = arith.constant 0 : i32
    %c0_i32_0 = arith.constant 0 : i32
    %c0_i32_1 = arith.constant 0 : i32
    return %c0_i32, %c0_i32_0 : i32, i32
  }
  func.func @transform_3(%arg0: i32) -> (i32, i32) {
    %c0_i32 = arith.constant 0 : i32
    %c0_i32_0 = arith.constant 0 : i32
    %c0_i32_1 = arith.constant 0 : i32
    return %c0_i32, %c0_i32_0 : i32, i32
  }
  func.func @transform_4(%arg0: i32) -> (i32, i32) {
    %c0_i32 = arith.constant 0 : i32
    %c0_i32_0 = arith.constant 0 : i32
    %c0_i32_1 = arith.constant 0 : i32
    return %c0_i32, %c0_i32_0 : i32, i32
  }
  func.func @transform_5(%arg0: i32) -> (i32, i32) {
    %c0_i32 = arith.constant 0 : i32
    %c0_i32_0 = arith.constant 0 : i32
    %c0_i32_1 = arith.constant 0 : i32
    return %c0_i32, %c0_i32_0 : i32, i32
  }
  func.func @transform_6(%arg0: i32) -> (i32, i32, i32) {
    %c0_i32 = arith.constant 0 : i32
    %c0_i32_0 = arith.constant 0 : i32
    %c0_i32_1 = arith.constant 0 : i32
    return %arg0, %c0_i32, %c0_i32_0 : i32, i32, i32
  }
}

</mosaic_0001>

<llo_original>
// kernel: tpu_custom_call.1
$region0: #{tpu_custom_call.1}
  #allocation0 [shape = 'u32[]', space=smem, size = 0x4, offset = 0x4, fixed_abs, tag = 'smem constant byte address 0x4 - core index']
  #allocation1 [shape = 'u32[144,128]{1,0:T(1,128)}', space=vmem, size = 0x12000, scoped, tag = 'internal scratch']
  #allocation2 [shape = 'f32[8,128]{1,0:T(8,128)}', space=vmem, size = 0x1000, scoped, tag = 'scratch operand']
  #allocation3 [shape = 'f32[8,128]{1,0:T(8,128)}', space=vmem, size = 0x1000, scoped, tag = 'scratch operand']
  #allocation4 [shape = 'f32[4,8,512]{2,1,0:T(8,128)}', space=vmem, size = 0x10000, scoped, tag = 'scratch operand']
  #allocation5 [shape = 'f32[4,8,128]{2,1,0:T(8,128)}', space=vmem, size = 0x4000, scoped, tag = 'scratch operand']
  %s0 = inlined_call_operand.hbm [shape: f32[8,8,128], index: 0, kind: input, shape index: {}]
  %s1 = inlined_call_operand.hbm [shape: f32[128,512], index: 1, kind: input, shape index: {}]
  %s2 = inlined_call_operand.hbm [shape: f32[128,512], index: 2, kind: input, shape index: {}]
  %s3 = inlined_call_operand.vmem [shape: f32[1,512], index: 3, kind: input, shape index: {}]
  %s4 = inlined_call_operand.vmem [shape: f32[1,128], index: 4, kind: input, shape index: {}]
  %s5 = inlined_call_operand.vmem [shape: f32[1,128], index: 5, kind: input, shape index: {}]
  %s6 = inlined_call_operand.hbm [shape: f32[8,8,128], index: 6, kind: output, shape index: {}]
  %s7 = sld [smem:[#allocation0]]
  $region73: #{tpu_custom_call.1} parent=0
    _
  %s9 = ssub.s32 1, %s7
  %s10 = scalar_select 0, %s9, %s7
  $region1: #{tpu_custom_call.1} parent=0
    #allocation6 [shape = 'u8[32768]{0}', space=vmem, size = 0x8000, scoped, tag = 'input window, operand 0']
    #allocation7 [shape = 's32[2]{0}', space=sflag, size = 0x8, scoped, tag = 'scoped memory for tpu_custom_call.1']
    #allocation8 [shape = 's32[2]{0}', space=sflag, size = 0x8, scoped, tag = 'scoped memory for tpu_custom_call.1']
    #allocation9 [shape = 'u8[262144]{0}', space=vmem, size = 0x40000, scoped, tag = 'input window, operand 1, single buffered']
    #allocation10 [shape = 's32[1]{0}', space=sflag, size = 0x4, scoped, tag = 'scoped memory for tpu_custom_call.1']
    #allocation11 [shape = 'u8[262144]{0}', space=vmem, size = 0x40000, scoped, tag = 'input window, operand 2, single buffered']
    #allocation12 [shape = 'u8[32768]{0}', space=vmem, size = 0x8000, scoped, tag = 'output window, operand 0']
    %11 = vsyncpa [#allocation7], 0
    %s12 = scalar_lea.sflag [#allocation7], 1
    %13 = vsyncpa %s12, 0
    %14 = vsyncpa [#allocation10], 0
    %15 = vsyncpa [#allocation8], 0
    %s16 = scalar_lea.sflag [#allocation8], 1
    %17 = vsyncpa %s16, 0
    loop: start=0, step=1, limit=4
    $region2: #{tpu_custom_call.1} parent=1 // loop_pre_header
      _
    $region3: #{tpu_custom_call.1} parent=1 // loop_header
      %s19 = sphi 0, %s23
      %p20 = scmp.ge.s32.totalorder %s19, 4
      %s29 = sphi 0, %s31
      %s32 = sphi 0, %s29
      %s33 = sphi 0, %s32
      %s49 = sphi 0, %s33
      %s53 = sphi 0, %s53
      %s55 = sphi 0, %s53
      %s56 = sphi 0, %s55
      %s70 = sphi 0, %s56
      %s74 = sphi 0, %s74
      %s76 = sphi 0, %s74
      %s77 = sphi 0, %s76
      %s91 = sphi 0, %s77
      %s95 = sphi 0, %s95
      %s97 = sphi 0, %s95
      %s98 = sphi 0, %s97
      %s112 = sphi 0, %s98
      %s116 = sphi 0, %s116
      %s118 = sphi 0, %s116
      %s119 = sphi 0, %s118
      %s133 = sphi 0, %s119
      %s137 = sphi 0, %s137
      %s139 = sphi 0, %s137
      %s140 = sphi 0, %s139
      %s154 = sphi 0, %s140
      %s160 = sphi 0, %s162
      %s163 = sphi 0, %s160
      %s164 = sphi 0, %s163
      %s180 = sphi 0, %s164
    $region4: #{tpu_custom_call.1} parent=1 // loop_header_branch
      %22 = sbr.rel (%p20) target = $region8
    $region5: #{tpu_custom_call.1} parent=1 // loop_body
      %s24 = ssub.s32 %s19, 1
      %s25 = ssub.s32 %s19, 2
      %s26 = sadd.s32 %s19, 1
      %s27 = ssub.s32 %s19, %s26
      %p28 = scmp.eq.s32.totalorder %s27, 0
      %s30 = sadd.s32 %s29, 1
      %s31 = scalar_select %p28, %s29, %s30
      %p34 = pneg %p28
      %p35 = scmp.eq.s32.totalorder %s19, 1
      %p36 = por %p34, %p35
      %p37 = scmp.ne.s32.totalorder %s29, %s32
      %p38 = scmp.eq.s32.totalorder %s19, 0
      %p39 = por %p37, %p38
      %p40 = scmp.ne.s32.totalorder %s29, %s32
      %p41 = scmp.eq.s32.totalorder %s24, 1
      %p42 = por %p40, %p41
      %p43 = scmp.ne.s32.totalorder %s32, %s33
      %p44 = scmp.eq.s32.totalorder %s24, 0
      %p45 = por %p43, %p44
      %p46 = scmp.ne.s32.totalorder %s32, %s33
      %p47 = scmp.eq.s32.totalorder %s25, 1
      %p48 = por %p46, %p47
      %p50 = scmp.ne.s32.totalorder %s33, %s49
      %p51 = scmp.eq.s32.totalorder %s25, 0
      %p52 = por %p50, %p51
      %s54 = sadd.s32 %s53, 1
      %p57 = scmp.eq.s32.totalorder %s19, 1
      %p58 = scmp.ne.s32.totalorder %s53, %s55
      %p59 = scmp.eq.s32.totalorder %s19, 0
      %p60 = por %p58, %p59
      %p61 = scmp.ne.s32.totalorder %s53, %s55
      %p62 = scmp.eq.s32.totalorder %s24, 1
      %p63 = por %p61, %p62
      %p64 = scmp.ne.s32.totalorder %s55, %s56
      %p65 = scmp.eq.s32.totalorder %s24, 0
      %p66 = por %p64, %p65
      %p67 = scmp.ne.s32.totalorder %s55, %s56
      %p68 = scmp.eq.s32.totalorder %s25, 1
      %p69 = por %p67, %p68
      %p71 = scmp.ne.s32.totalorder %s56, %s70
      %p72 = scmp.eq.s32.totalorder %s25, 0
      %p73 = por %p71, %p72
      %s75 = sadd.s32 %s74, 1
      %p78 = scmp.eq.s32.totalorder %s19, 1
      %p79 = scmp.ne.s32.totalorder %s74, %s76
      %p80 = scmp.eq.s32.totalorder %s19, 0
      %p81 = por %p79, %p80
      %p82 = scmp.ne.s32.totalorder %s74, %s76
      %p83 = scmp.eq.s32.totalorder %s24, 1
      %p84 = por %p82, %p83
      %p85 = scmp.ne.s32.totalorder %s76, %s77
      %p86 = scmp.eq.s32.totalorder %s24, 0
      %p87 = por %p85, %p86
      %p88 = scmp.ne.s32.totalorder %s76, %s77
      %p89 = scmp.eq.s32.totalorder %s25, 1
      %p90 = por %p88, %p89
      %p92 = scmp.ne.s32.totalorder %s77, %s91
      %p93 = scmp.eq.s32.totalorder %s25, 0
      %p94 = por %p92, %p93
      %s96 = sadd.s32 %s95, 1
      %p99 = scmp.eq.s32.totalorder %s19, 1
      %p100 = scmp.ne.s32.totalorder %s95, %s97
      %p101 = scmp.eq.s32.totalorder %s19, 0
      %p102 = por %p100, %p101
      %p103 = scmp.ne.s32.totalorder %s95, %s97
      %p104 = scmp.eq.s32.totalorder %s24, 1
      %p105 = por %p103, %p104
      %p106 = scmp.ne.s32.totalorder %s97, %s98
      %p107 = scmp.eq.s32.totalorder %s24, 0
      %p108 = por %p106, %p107
      %p109 = scmp.ne.s32.totalorder %s97, %s98
      %p110 = scmp.eq.s32.totalorder %s25, 1
      %p111 = por %p109, %p110
      %p113 = scmp.ne.s32.totalorder %s98, %s112
      %p114 = scmp.eq.s32.totalorder %s25, 0
      %p115 = por %p113, %p114
      %s117 = sadd.s32 %s116, 1
      %p120 = scmp.eq.s32.totalorder %s19, 1
      %p121 = scmp.ne.s32.totalorder %s116, %s118
      %p122 = scmp.eq.s32.totalorder %s19, 0
      %p123 = por %p121, %p122
      %p124 = scmp.ne.s32.totalorder %s116, %s118
      %p125 = scmp.eq.s32.totalorder %s24, 1
      %p126 = por %p124, %p125
      %p127 = scmp.ne.s32.totalorder %s118, %s119
      %p128 = scmp.eq.s32.totalorder %s24, 0
      %p129 = por %p127, %p128
      %p130 = scmp.ne.s32.totalorder %s118, %s119
      %p131 = scmp.eq.s32.totalorder %s25, 1
      %p132 = por %p130, %p131
      %p134 = scmp.ne.s32.totalorder %s119, %s133
      %p135 = scmp.eq.s32.totalorder %s25, 0
      %p136 = por %p134, %p135
      %s138 = sadd.s32 %s137, 1
      %p141 = scmp.eq.s32.totalorder %s19, 1
      %p142 = scmp.ne.s32.totalorder %s137, %s139
      %p143 = scmp.eq.s32.totalorder %s19, 0
      %p144 = por %p142, %p143
      %p145 = scmp.ne.s32.totalorder %s137, %s139
      %p146 = scmp.eq.s32.totalorder %s24, 1
      %p147 = por %p145, %p146
      %p148 = scmp.ne.s32.totalorder %s139, %s140
      %p149 = scmp.eq.s32.totalorder %s24, 0
      %p150 = por %p148, %p149
      %p151 = scmp.ne.s32.totalorder %s139, %s140
      %p152 = scmp.eq.s32.totalorder %s25, 1
      %p153 = por %p151, %p152
      %p155 = scmp.ne.s32.totalorder %s140, %s154
      %p156 = scmp.eq.s32.totalorder %s25, 0
      %p157 = por %p155, %p156
      %s158 = ssub.s32 %s19, %s26
      %p159 = scmp.eq.s32.totalorder %s158, 0
      %s161 = sadd.s32 %s160, 1
      %s162 = scalar_select %p159, %s160, %s161
      %p165 = pneg %p159
      %p166 = scmp.eq.s32.totalorder %s19, 1
      %p167 = por %p165, %p166
      %p168 = scmp.ne.s32.totalorder %s160, %s163
      %p169 = scmp.eq.s32.totalorder %s19, 0
      %p170 = por %p168, %p169
      %p171 = scmp.ne.s32.totalorder %s160, %s163
      %p172 = scmp.eq.s32.totalorder %s24, 1
      %p173 = por %p171, %p172
      %p174 = scmp.ne.s32.totalorder %s163, %s164
      %p175 = scmp.eq.s32.totalorder %s24, 0
      %p176 = por %p174, %p175
      %p177 = scmp.ne.s32.totalorder %s163, %s164
      %p178 = scmp.eq.s32.totalorder %s25, 1
      %p179 = por %p177, %p178
      %p181 = scmp.ne.s32.totalorder %s164, %s180
      %p182 = scmp.eq.s32.totalorder %s25, 0
      %p183 = por %p181, %p182
      %p184 = scmp.le.s32.totalorder 1, %s19
      %p185 = scmp.lt.s32.totalorder %s19, 3
      %p186 = pnand %p184, %p185
      %p187 = pneg %p186
      // Predicated region
      $region9: #{tpu_custom_call.1} parent=5 // pred_check
        _
      $region10: #{tpu_custom_call.1} parent=5 // pred_check_branch
        %189 = sbr.rel (%p186) target = $region12
      $region11: #{tpu_custom_call.1} parent=5 // pred_region
        %s190 = ssub.s32 %s19, 1
        // Predicated region
        $region13: #{tpu_custom_call.1} parent=11 // pred_check
          %p191 = pneg %p66
        $region14: #{tpu_custom_call.1} parent=11 // pred_check_branch
          %193 = sbr.rel (%p191) target = $region16
        $region15: #{tpu_custom_call.1} parent=11 // pred_region
          %s195 = ssub.s32 8192, 8192
          %196 = vsyncadd [#allocation10], %s195
          %s197 = sshll.u32 [#allocation9], 4
          %s198 = int_to_ptr.vmem [resolvable:$true] %s197
          %203 = dma.hbm_to_vmem [thread:$0]  %s1, 8192, %s198, [#allocation10], 512, 512, 32
        $region16: #{tpu_custom_call.1} parent=11 // pred_fallthru
          _
        // Predicated region
        $region17: #{tpu_custom_call.1} parent=11 // pred_check
          %p204 = pneg %p87
        $region18: #{tpu_custom_call.1} parent=11 // pred_check_branch
          %206 = sbr.rel (%p204) target = $region20
        $region19: #{tpu_custom_call.1} parent=11 // pred_region
          %s208 = ssub.s32 8192, 8192
          %209 = vsyncadd [#allocation10], %s208
          %s210 = sshll.u32 [#allocation11], 4
          %s211 = int_to_ptr.vmem [resolvable:$true] %s210
          %216 = dma.hbm_to_vmem [thread:$0]  %s2, 8192, %s211, [#allocation10], 512, 512, 32
        $region20: #{tpu_custom_call.1} parent=11 // pred_fallthru
          _
        // Predicated region
        $region21: #{tpu_custom_call.1} parent=11 // pred_check
          %p217 = pneg %p108
        $region22: #{tpu_custom_call.1} parent=11 // pred_check_branch
          %219 = sbr.rel (%p217) target = $region24
        $region23: #{tpu_custom_call.1} parent=11 // pred_region
          _
        $region24: #{tpu_custom_call.1} parent=11 // pred_fallthru
          _
        // Predicated region
        $region25: #{tpu_custom_call.1} parent=11 // pred_check
          %p220 = pneg %p129
        $region26: #{tpu_custom_call.1} parent=11 // pred_check_branch
          %222 = sbr.rel (%p220) target = $region28
        $region27: #{tpu_custom_call.1} parent=11 // pred_region
          _
        $region28: #{tpu_custom_call.1} parent=11 // pred_fallthru
          _
        // Predicated region
        $region29: #{tpu_custom_call.1} parent=11 // pred_check
          %p223 = pneg %p150
        $region30: #{tpu_custom_call.1} parent=11 // pred_check_branch
          %225 = sbr.rel (%p223) target = $region32
        $region31: #{tpu_custom_call.1} parent=11 // pred_region
          _
        $region32: #{tpu_custom_call.1} parent=11 // pred_fallthru
          _
      $region12: #{tpu_custom_call.1} parent=5 // pred_fallthru
        _
      %p226 = scmp.lt.s32.totalorder %s19, 2
      // Predicated region
      $region33: #{tpu_custom_call.1} parent=5 // pred_check
        %p227 = pneg %p226
      $region34: #{tpu_custom_call.1} parent=5 // pred_check_branch
        %229 = sbr.rel (%p227) target = $region36
      $region35: #{tpu_custom_call.1} parent=5 // pred_region
        // Predicated region
        $region37: #{tpu_custom_call.1} parent=35 // pred_check
          %p230 = pneg %p39
        $region38: #{tpu_custom_call.1} parent=35 // pred_check_branch
          %232 = sbr.rel (%p230) target = $region40
        $region39: #{tpu_custom_call.1} parent=35 // pred_region
          %s233 = sand.u32 %s29, 1
          %s234 = scalar_lea.sflag [#allocation7], %s233
          %s235 = sand.u32 %s29, 1
          %s236 = smul.addr %s235, 32
          %s237 = scalar_lea.vmem [#allocation6], %s236
          %s238 = smul.u32 4, %s19
          %s240 = ssub.s32 512, 512
          %241 = vsyncadd %s234, %s240
          %s242 = smul.addr %s238, 128
          %s243 = scalar_lea.hbm %s0, %s242
          %s244 = sshll.u32 %s237, 4
          %s245 = int_to_ptr.vmem [resolvable:$true] %s244
          %250 = dma.hbm_to_vmem [thread:$0]  %s243, 512, %s245, %s234, 128, 128, 8
        $region40: #{tpu_custom_call.1} parent=35 // pred_fallthru
          _
      $region36: #{tpu_custom_call.1} parent=5 // pred_fallthru
        _
      %p251 = scmp.le.s32.totalorder 1, %s19
      %p252 = scmp.lt.s32.totalorder %s19, 3
      %p253 = pnand %p251, %p252
      %p254 = pneg %p253
      // Predicated region
      $region41: #{tpu_custom_call.1} parent=5 // pred_check
        _
      $region42: #{tpu_custom_call.1} parent=5 // pred_check_branch
        %256 = sbr.rel (%p253) target = $region44
      $region43: #{tpu_custom_call.1} parent=5 // pred_region
        %s257 = ssub.s32 %s19, 1
        %s258 = sand.u32 %s32, 1
        %s259 = scalar_lea.sflag [#allocation7], %s258
        %s260 = sand.u32 %s32, 1
        %s261 = smul.addr %s260, 32
        %s262 = scalar_lea.vmem [#allocation6], %s261
        // Predicated region
        $region45: #{tpu_custom_call.1} parent=43 // pred_check
          %p263 = pneg %p45
        $region46: #{tpu_custom_call.1} parent=43 // pred_check_branch
          %265 = sbr.rel (%p263) target = $region48
        $region47: #{tpu_custom_call.1} parent=43 // pred_region
          %266 = dma.done %s259, 512
        $region48: #{tpu_custom_call.1} parent=43 // pred_fallthru
          _
        // Predicated region
        $region49: #{tpu_custom_call.1} parent=43 // pred_check
          %p267 = pneg %p66
        $region50: #{tpu_custom_call.1} parent=43 // pred_check_branch
          %269 = sbr.rel (%p267) target = $region52
        $region51: #{tpu_custom_call.1} parent=43 // pred_region
          %270 = dma.done [#allocation10], 8192
        $region52: #{tpu_custom_call.1} parent=43 // pred_fallthru
          _
        // Predicated region
        $region53: #{tpu_custom_call.1} parent=43 // pred_check
          %p271 = pneg %p87
        $region54: #{tpu_custom_call.1} parent=43 // pred_check_branch
          %273 = sbr.rel (%p271) target = $region56
        $region55: #{tpu_custom_call.1} parent=43 // pred_region
          %274 = dma.done [#allocation10], 8192
        $region56: #{tpu_custom_call.1} parent=43 // pred_fallthru
          _
        %s275 = sand.u32 %s32, 1
        %s276 = scalar_lea.sflag [#allocation7], %s275
        %s277 = sand.u32 %s32, 1
        %s278 = smul.addr %s277, 32
        %s279 = scalar_lea.vmem [#allocation6], %s278
        %p280 = pneg %p45
        %p281 = pneg %p42
        %p282 = pneg %p66
        %p283 = pneg %p63
        %p284 = pneg %p87
        %p285 = pneg %p84
        %p286 = pneg %p108
        %p287 = pneg %p105
        %p288 = pneg %p129
        %p289 = pneg %p126
        %p290 = pneg %p150
        %p291 = pneg %p147
        %p292 = pneg %p176
        %p293 = pneg %p173
        %s294 = sand.u32 %s163, 1
        %s295 = scalar_lea.sflag [#allocation8], %s294
        %s296 = sand.u32 %s163, 1
        %s297 = smul.addr %s296, 32
        %s298 = scalar_lea.vmem [#allocation12], %s297
        %s299 = smul.u32 4, %s24
        %s300 = smul.u32 4, %s24
        %p301 = scmp.eq.s32.totalorder %s24, 0
        // Predicated region
        $region57: #{tpu_custom_call.1} parent=43 // pred_check
          %p302 = pneg %p301
        $region58: #{tpu_custom_call.1} parent=43 // pred_check_branch
          %304 = sbr.rel (%p302) target = $region60
        $region59: #{tpu_custom_call.1} parent=43 // pred_region
          %305 = vst [vmem:[#allocation2] sm:$0xff] 0.0
          %306 = vst [vmem:[#allocation3] sm:$0xff] 0.0
        $region60: #{tpu_custom_call.1} parent=43 // pred_fallthru
          _
        %v307 = vld [vmem:[%s262] sm:$0xff]
        %v308 = vld [vmem:[%s262 + $0x8] sm:$0xff]
        %v309 = vld [vmem:[%s262 + $0x10] sm:$0xff]
        %v310 = vld [vmem:[%s262 + $0x18] sm:$0xff]
        %v311 = vld [vmem:[#allocation9] sm:$0xff]
        %v312 = vld [vmem:[#allocation9 + $0x8] sm:$0xff]
        %v313 = vld [vmem:[#allocation9 + $0x10] sm:$0xff]
        %v314 = vld [vmem:[#allocation9 + $0x18] sm:$0xff]
        %v315 = vld [vmem:[#allocation9 + $0x20] sm:$0xff]
        %v316 = vld [vmem:[#allocation9 + $0x28] sm:$0xff]
        %v317 = vld [vmem:[#allocation9 + $0x30] sm:$0xff]
        %v318 = vld [vmem:[#allocation9 + $0x38] sm:$0xff]
        %v319 = vld [vmem:[#allocation9 + $0x40] sm:$0xff]
        %v320 = vld [vmem:[#allocation9 + $0x48] sm:$0xff]
        %v321 = vld [vmem:[#allocation9 + $0x50] sm:$0xff]
        %v322 = vld [vmem:[#allocation9 + $0x58] sm:$0xff]
        %v323 = vld [vmem:[#allocation9 + $0x60] sm:$0xff]
        %v324 = vld [vmem:[#allocation9 + $0x68] sm:$0xff]
        %v325 = vld [vmem:[#allocation9 + $0x70] sm:$0xff]
        %v326 = vld [vmem:[#allocation9 + $0x78] sm:$0xff]
        %v327 = vld [vmem:[#allocation9 + $0x80] sm:$0xff]
        %v328 = vld [vmem:[#allocation9 + $0x88] sm:$0xff]
        %v329 = vld [vmem:[#allocation9 + $0x90] sm:$0xff]
        %v330 = vld [vmem:[#allocation9 + $0x98] sm:$0xff]
        %v331 = vld [vmem:[#allocation9 + $0xa0] sm:$0xff]
        %v332 = vld [vmem:[#allocation9 + $0xa8] sm:$0xff]
        %v333 = vld [vmem:[#allocation9 + $0xb0] sm:$0xff]
        %v334 = vld [vmem:[#allocation9 + $0xb8] sm:$0xff]
        %v335 = vld [vmem:[#allocation9 + $0xc0] sm:$0xff]
        %v336 = vld [vmem:[#allocation9 + $0xc8] sm:$0xff]
        %v337 = vld [vmem:[#allocation9 + $0xd0] sm:$0xff]
        %v338 = vld [vmem:[#allocation9 + $0xd8] sm:$0xff]
        %v339 = vld [vmem:[#allocation9 + $0xe0] sm:$0xff]
        %v340 = vld [vmem:[#allocation9 + $0xe8] sm:$0xff]
        %v341 = vld [vmem:[#allocation9 + $0xf0] sm:$0xff]
        %v342 = vld [vmem:[#allocation9 + $0xf8] sm:$0xff]
        %v343 = vld [vmem:[#allocation9 + $0x100] sm:$0xff]
        %v344 = vld [vmem:[#allocation9 + $0x108] sm:$0xff]
        %v345 = vld [vmem:[#allocation9 + $0x110] sm:$0xff]
        %v346 = vld [vmem:[#allocation9 + $0x118] sm:$0xff]
        %v347 = vld [vmem:[#allocation9 + $0x120] sm:$0xff]
        %v348 = vld [vmem:[#allocation9 + $0x128] sm:$0xff]
        %v349 = vld [vmem:[#allocation9 + $0x130] sm:$0xff]
        %v350 = vld [vmem:[#allocation9 + $0x138] sm:$0xff]
        %v351 = vld [vmem:[#allocation9 + $0x140] sm:$0xff]
        %v352 = vld [vmem:[#allocation9 + $0x148] sm:$0xff]
        %v353 = vld [vmem:[#allocation9 + $0x150] sm:$0xff]
        %v354 = vld [vmem:[#allocation9 + $0x158] sm:$0xff]
        %v355 = vld [vmem:[#allocation9 + $0x160] sm:$0xff]
        %v356 = vld [vmem:[#allocation9 + $0x168] sm:$0xff]
        %v357 = vld [vmem:[#allocation9 + $0x170] sm:$0xff]
        %v358 = vld [vmem:[#allocation9 + $0x178] sm:$0xff]
        %v359 = vld [vmem:[#allocation9 + $0x180] sm:$0xff]
        %v360 = vld [vmem:[#allocation9 + $0x188] sm:$0xff]
        %v361 = vld [vmem:[#allocation9 + $0x190] sm:$0xff]
        %v362 = vld [vmem:[#allocation9 + $0x198] sm:$0xff]
        %v363 = vld [vmem:[#allocation9 + $0x1a0] sm:$0xff]
        %v364 = vld [vmem:[#allocation9 + $0x1a8] sm:$0xff]
        %v365 = vld [vmem:[#allocation9 + $0x1b0] sm:$0xff]
        %v366 = vld [vmem:[#allocation9 + $0x1b8] sm:$0xff]
        %v367 = vld [vmem:[#allocation9 + $0x1c0] sm:$0xff]
        %v368 = vld [vmem:[#allocation9 + $0x1c8] sm:$0xff]
        %v369 = vld [vmem:[#allocation9 + $0x1d0] sm:$0xff]
        %v370 = vld [vmem:[#allocation9 + $0x1d8] sm:$0xff]
        %v371 = vld [vmem:[#allocation9 + $0x1e0] sm:$0xff]
        %v372 = vld [vmem:[#allocation9 + $0x1e8] sm:$0xff]
        %v373 = vld [vmem:[#allocation9 + $0x1f0] sm:$0xff]
        %v374 = vld [vmem:[#allocation9 + $0x1f8] sm:$0xff]
        %v375 = vld [vmem:[%s3] sm:$0xf]
        %v377 = vlaneseq
        %v378 = vshrl.u32 %v377, 7
        %v379 = vsub.s32 0, %v378
        %v380 = vrot.slane %v375, %v379
        %v381 = vlaneseq
        %v382 = vshrl.u32 %v381, 7
        %v383 = vsub.s32 1, %v382
        %v384 = vrot.slane %v375, %v383
        %v385 = vlaneseq
        %v386 = vshrl.u32 %v385, 7
        %v387 = vsub.s32 2, %v386
        %v388 = vrot.slane %v375, %v387
        %v389 = vlaneseq
        %v390 = vshrl.u32 %v389, 7
        %v391 = vsub.s32 3, %v390
        %v392 = vrot.slane %v375, %v391
        %397 = vmatprep.subr.mxu0 %v372
        %398 = vmatpush1.msra.mxu0 %v371
        %399 = vmatprep.subr.mxu0 %v368
        %400 = vmatpush1.msra.mxu0 %v367
        %401 = vmatprep.subr.mxu0 %v364
        %402 = vmatpush1.msra.mxu0 %v363
        %403 = vmatprep.subr.mxu0 %v360
        %404 = vmatpush1.msra.mxu0 %v359
        %405 = vmatprep.subr.mxu0 %v356
        %406 = vmatpush1.msra.mxu0 %v355
        %407 = vmatprep.subr.mxu0 %v352
        %408 = vmatpush1.msra.mxu0 %v351
        %409 = vmatprep.subr.mxu0 %v348
        %410 = vmatpush1.msra.mxu0 %v347
        %411 = vmatprep.subr.mxu0 %v344
        %412 = vmatpush1.msra.mxu0 %v343
        %413 = vmatprep.subr.mxu0 %v340
        %414 = vmatpush1.msra.mxu0 %v339
        %415 = vmatprep.subr.mxu0 %v336
        %416 = vmatpush1.msra.mxu0 %v335
        %417 = vmatprep.subr.mxu0 %v332
        %418 = vmatpush1.msra.mxu0 %v331
        %419 = vmatprep.subr.mxu0 %v328
        %420 = vmatpush1.msra.mxu0 %v327
        %421 = vmatprep.subr.mxu0 %v324
        %422 = vmatpush1.msra.mxu0 %v323
        %423 = vmatprep.subr.mxu0 %v320
        %424 = vmatpush1.msra.mxu0 %v319
        %425 = vmatprep.subr.mxu0 %v316
        %426 = vmatpush1.msra.mxu0 %v315
        %427 = vmatprep.subr.mxu0 %v312
        %428 = vmatpush1.msra.mxu0 %v311
        %429 = vmatprep.subr.mxu0 0.0
        %430 = vmatpush2.msra.mxu0 0.0
        %431 = vmatprep.subr.mxu0 0.0
        %432 = vmatpush2.msra.mxu0 0.0
        %433 = vmatprep.subr.mxu0 0.0
        %434 = vmatpush2.msra.mxu0 0.0
        %435 = vmatprep.subr.mxu0 0.0
        %436 = vmatpush2.msra.mxu0 0.0
        %437 = vmatprep.subr.mxu0 0.0
        %438 = vmatpush2.msra.mxu0 0.0
        %439 = vmatprep.subr.mxu0 0.0
        %440 = vmatpush2.msra.mxu0 0.0
        %441 = vmatprep.subr.mxu0 0.0
        %442 = vmatpush2.msra.mxu0 0.0
        %443 = vmatprep.subr.mxu0 0.0
        %444 = vmatpush2.msra.mxu0 0.0
        %445 = vmatprep.subr.mxu0 0.0
        %446 = vmatpush2.msra.mxu0 0.0
        %447 = vmatprep.subr.mxu0 0.0
        %448 = vmatpush2.msra.mxu0 0.0
        %449 = vmatprep.subr.mxu0 0.0
        %450 = vmatpush2.msra.mxu0 0.0
        %451 = vmatprep.subr.mxu0 0.0
        %452 = vmatpush2.msra.mxu0 0.0
        %453 = vmatprep.subr.mxu0 0.0
        %454 = vmatpush2.msra.mxu0 0.0
        %455 = vmatprep.subr.mxu0 0.0
        %456 = vmatpush2.msra.mxu0 0.0
        %457 = vmatprep.subr.mxu0 0.0
        %458 = vmatpush2.msra.mxu0 0.0
        %459 = vmatprep.subr.mxu0 0.0
        %460 = vmatpush2.msra.mxu0 0.0
        %461 = vmatprep.mubr.f32.mxu0 0.0
        %462 = vmatmul.mubr.f32.gmra.mxu0 %v307
        %v463 = vpop.f32.mrf.mxu0
        %v464 = vadd.f32 %v380, %v463
        %v465 = vpop.f32.mrf.mxu0
        %v466 = vadd.f32 %v384, %v465
        %467 = vmatprep.mubr.f32.mxu0 0.0
        %468 = vmatmul.mubr.f32.gmra.mxu0 %v308
        %v469 = vpop.f32.mrf.mxu0
        %v470 = vadd.f32 %v380, %v469
        %v471 = vpop.f32.mrf.mxu0
        %v472 = vadd.f32 %v384, %v471
        %473 = vmatprep.mubr.f32.mxu0 0.0
        %474 = vmatmul.mubr.f32.gmra.mxu0 %v309
        %v475 = vpop.f32.mrf.mxu0
        %v476 = vadd.f32 %v380, %v475
        %v477 = vpop.f32.mrf.mxu0
        %v478 = vadd.f32 %v384, %v477
        %479 = vmatprep.mubr.f32.mxu0 0.0
        %480 = vmatmul.mubr.f32.gmra.mxu0 %v310
        %v481 = vpop.f32.mrf.mxu0
        %v482 = vadd.f32 %v380, %v481
        %v483 = vpop.f32.mrf.mxu0
        %v484 = vadd.f32 %v384, %v483
        %485 = vdwg.mxu0
        %486 = vmatprep.subr.mxu0 %v374
        %487 = vmatpush1.msra.mxu0 %v373
        %488 = vmatprep.subr.mxu0 %v370
        %489 = vmatpush1.msra.mxu0 %v369
        %490 = vmatprep.subr.mxu0 %v366
        %491 = vmatpush1.msra.mxu0 %v365
        %492 = vmatprep.subr.mxu0 %v362
        %493 = vmatpush1.msra.mxu0 %v361
        %494 = vmatprep.subr.mxu0 %v358
        %495 = vmatpush1.msra.mxu0 %v357
        %496 = vmatprep.subr.mxu0 %v354
        %497 = vmatpush1.msra.mxu0 %v353
        %498 = vmatprep.subr.mxu0 %v350
        %499 = vmatpush1.msra.mxu0 %v349
        %500 = vmatprep.subr.mxu0 %v346
        %501 = vmatpush1.msra.mxu0 %v345
        %502 = vmatprep.subr.mxu0 %v342
        %503 = vmatpush1.msra.mxu0 %v341
        %504 = vmatprep.subr.mxu0 %v338
        %505 = vmatpush1.msra.mxu0 %v337
        %506 = vmatprep.subr.mxu0 %v334
        %507 = vmatpush1.msra.mxu0 %v333
        %508 = vmatprep.subr.mxu0 %v330
        %509 = vmatpush1.msra.mxu0 %v329
        %510 = vmatprep.subr.mxu0 %v326
        %511 = vmatpush1.msra.mxu0 %v325
        %512 = vmatprep.subr.mxu0 %v322
        %513 = vmatpush1.msra.mxu0 %v321
        %514 = vmatprep.subr.mxu0 %v318
        %515 = vmatpush1.msra.mxu0 %v317
        %516 = vmatprep.subr.mxu0 %v314
        %517 = vmatpush1.msra.mxu0 %v313
        %518 = vmatprep.subr.mxu0 0.0
        %519 = vmatpush2.msra.mxu0 0.0
        %520 = vmatprep.subr.mxu0 0.0
        %521 = vmatpush2.msra.mxu0 0.0
        %522 = vmatprep.subr.mxu0 0.0
        %523 = vmatpush2.msra.mxu0 0.0
        %524 = vmatprep.subr.mxu0 0.0
        %525 = vmatpush2.msra.mxu0 0.0
        %526 = vmatprep.subr.mxu0 0.0
        %527 = vmatpush2.msra.mxu0 0.0
        %528 = vmatprep.subr.mxu0 0.0
        %529 = vmatpush2.msra.mxu0 0.0
        %530 = vmatprep.subr.mxu0 0.0
        %531 = vmatpush2.msra.mxu0 0.0
        %532 = vmatprep.subr.mxu0 0.0
        %533 = vmatpush2.msra.mxu0 0.0
        %534 = vmatprep.subr.mxu0 0.0
        %535 = vmatpush2.msra.mxu0 0.0
        %536 = vmatprep.subr.mxu0 0.0
        %537 = vmatpush2.msra.mxu0 0.0
        %538 = vmatprep.subr.mxu0 0.0
        %539 = vmatpush2.msra.mxu0 0.0
        %540 = vmatprep.subr.mxu0 0.0
        %541 = vmatpush2.msra.mxu0 0.0
        %542 = vmatprep.subr.mxu0 0.0
        %543 = vmatpush2.msra.mxu0 0.0
        %544 = vmatprep.subr.mxu0 0.0
        %545 = vmatpush2.msra.mxu0 0.0
        %546 = vmatprep.subr.mxu0 0.0
        %547 = vmatpush2.msra.mxu0 0.0
        %548 = vmatprep.subr.mxu0 0.0
        %549 = vmatpush2.msra.mxu0 0.0
        %550 = vmatprep.mubr.f32.mxu0 0.0
        %551 = vmatmul.mubr.f32.gmra.mxu0 %v307
        %v552 = vpop.f32.mrf.mxu0
        %v553 = vadd.f32 %v388, %v552
        %v554 = vpop.f32.mrf.mxu0
        %v555 = vadd.f32 %v392, %v554
        %556 = vmatprep.mubr.f32.mxu0 0.0
        %557 = vmatmul.mubr.f32.gmra.mxu0 %v308
        %v558 = vpop.f32.mrf.mxu0
        %v559 = vadd.f32 %v388, %v558
        %v560 = vpop.f32.mrf.mxu0
        %v561 = vadd.f32 %v392, %v560
        %562 = vmatprep.mubr.f32.mxu0 0.0
        %563 = vmatmul.mubr.f32.gmra.mxu0 %v309
        %v564 = vpop.f32.mrf.mxu0
        %v565 = vadd.f32 %v388, %v564
        %v566 = vpop.f32.mrf.mxu0
        %v567 = vadd.f32 %v392, %v566
        %568 = vmatprep.mubr.f32.mxu0 0.0
        %569 = vmatmul.mubr.f32.gmra.mxu0 %v310
        %v570 = vpop.f32.mrf.mxu0
        %v571 = vadd.f32 %v388, %v570
        %v572 = vpop.f32.mrf.mxu0
        %v573 = vadd.f32 %v392, %v572
        %574 = vdwg.mxu0
        %575 = vst [vmem:[#allocation4] sm:$0xff] %v464
        %576 = vst [vmem:[#allocation4 + $0x8] sm:$0xff] %v466
        %577 = vst [vmem:[#allocation4 + $0x10] sm:$0xff] %v553
        %578 = vst [vmem:[#allocation4 + $0x18] sm:$0xff] %v555
        %579 = vst [vmem:[#allocation4 + $0x20] sm:$0xff] %v470
        %580 = vst [vmem:[#allocation4 + $0x28] sm:$0xff] %v472
        %581 = vst [vmem:[#allocation4 + $0x30] sm:$0xff] %v559
        %582 = vst [vmem:[#allocation4 + $0x38] sm:$0xff] %v561
        %583 = vst [vmem:[#allocation4 + $0x40] sm:$0xff] %v476
        %584 = vst [vmem:[#allocation4 + $0x48] sm:$0xff] %v478
        %585 = vst [vmem:[#allocation4 + $0x50] sm:$0xff] %v565
        %586 = vst [vmem:[#allocation4 + $0x58] sm:$0xff] %v567
        %587 = vst [vmem:[#allocation4 + $0x60] sm:$0xff] %v482
        %588 = vst [vmem:[#allocation4 + $0x68] sm:$0xff] %v484
        %589 = vst [vmem:[#allocation4 + $0x70] sm:$0xff] %v571
        %590 = vst [vmem:[#allocation4 + $0x78] sm:$0xff] %v573
        %v591 = vld [vmem:[#allocation11] sm:$0xff]
        %v592 = vld [vmem:[#allocation11 + $0x8] sm:$0xff]
        %v593 = vld [vmem:[#allocation11 + $0x10] sm:$0xff]
        %v594 = vld [vmem:[#allocation11 + $0x18] sm:$0xff]
        %v595 = vld [vmem:[#allocation11 + $0x20] sm:$0xff]
        %v596 = vld [vmem:[#allocation11 + $0x28] sm:$0xff]
        %v597 = vld [vmem:[#allocation11 + $0x30] sm:$0xff]
        %v598 = vld [vmem:[#allocation11 + $0x38] sm:$0xff]
        %v599 = vld [vmem:[#allocation11 + $0x40] sm:$0xff]
        %v600 = vld [vmem:[#allocation11 + $0x48] sm:$0xff]
        %v601 = vld [vmem:[#allocation11 + $0x50] sm:$0xff]
        %v602 = vld [vmem:[#allocation11 + $0x58] sm:$0xff]
        %v603 = vld [vmem:[#allocation11 + $0x60] sm:$0xff]
        %v604 = vld [vmem:[#allocation11 + $0x68] sm:$0xff]
        %v605 = vld [vmem:[#allocation11 + $0x70] sm:$0xff]
        %v606 = vld [vmem:[#allocation11 + $0x78] sm:$0xff]
        %v607 = vld [vmem:[#allocation11 + $0x80] sm:$0xff]
        %v608 = vld [vmem:[#allocation11 + $0x88] sm:$0xff]
        %v609 = vld [vmem:[#allocation11 + $0x90] sm:$0xff]
        %v610 = vld [vmem:[#allocation11 + $0x98] sm:$0xff]
        %v611 = vld [vmem:[#allocation11 + $0xa0] sm:$0xff]
        %v612 = vld [vmem:[#allocation11 + $0xa8] sm:$0xff]
        %v613 = vld [vmem:[#allocation11 + $0xb0] sm:$0xff]
        %v614 = vld [vmem:[#allocation11 + $0xb8] sm:$0xff]
        %v615 = vld [vmem:[#allocation11 + $0xc0] sm:$0xff]
        %v616 = vld [vmem:[#allocation11 + $0xc8] sm:$0xff]
        %v617 = vld [vmem:[#allocation11 + $0xd0] sm:$0xff]
        %v618 = vld [vmem:[#allocation11 + $0xd8] sm:$0xff]
        %v619 = vld [vmem:[#allocation11 + $0xe0] sm:$0xff]
        %v620 = vld [vmem:[#allocation11 + $0xe8] sm:$0xff]
        %v621 = vld [vmem:[#allocation11 + $0xf0] sm:$0xff]
        %v622 = vld [vmem:[#allocation11 + $0xf8] sm:$0xff]
        %v623 = vld [vmem:[#allocation11 + $0x100] sm:$0xff]
        %v624 = vld [vmem:[#allocation11 + $0x108] sm:$0xff]
        %v625 = vld [vmem:[#allocation11 + $0x110] sm:$0xff]
        %v626 = vld [vmem:[#allocation11 + $0x118] sm:$0xff]
        %v627 = vld [vmem:[#allocation11 + $0x120] sm:$0xff]
        %v628 = vld [vmem:[#allocation11 + $0x128] sm:$0xff]
        %v629 = vld [vmem:[#allocation11 + $0x130] sm:$0xff]
        %v630 = vld [vmem:[#allocation11 + $0x138] sm:$0xff]
        %v631 = vld [vmem:[#allocation11 + $0x140] sm:$0xff]
        %v632 = vld [vmem:[#allocation11 + $0x148] sm:$0xff]
        %v633 = vld [vmem:[#allocation11 + $0x150] sm:$0xff]
        %v634 = vld [vmem:[#allocation11 + $0x158] sm:$0xff]
        %v635 = vld [vmem:[#allocation11 + $0x160] sm:$0xff]
        %v636 = vld [vmem:[#allocation11 + $0x168] sm:$0xff]
        %v637 = vld [vmem:[#allocation11 + $0x170] sm:$0xff]
        %v638 = vld [vmem:[#allocation11 + $0x178] sm:$0xff]
        %v639 = vld [vmem:[#allocation11 + $0x180] sm:$0xff]
        %v640 = vld [vmem:[#allocation11 + $0x188] sm:$0xff]
        %v641 = vld [vmem:[#allocation11 + $0x190] sm:$0xff]
        %v642 = vld [vmem:[#allocation11 + $0x198] sm:$0xff]
        %v643 = vld [vmem:[#allocation11 + $0x1a0] sm:$0xff]
        %v644 = vld [vmem:[#allocation11 + $0x1a8] sm:$0xff]
        %v645 = vld [vmem:[#allocation11 + $0x1b0] sm:$0xff]
        %v646 = vld [vmem:[#allocation11 + $0x1b8] sm:$0xff]
        %v647 = vld [vmem:[#allocation11 + $0x1c0] sm:$0xff]
        %v648 = vld [vmem:[#allocation11 + $0x1c8] sm:$0xff]
        %v649 = vld [vmem:[#allocation11 + $0x1d0] sm:$0xff]
        %v650 = vld [vmem:[#allocation11 + $0x1d8] sm:$0xff]
        %v651 = vld [vmem:[#allocation11 + $0x1e0] sm:$0xff]
        %v652 = vld [vmem:[#allocation11 + $0x1e8] sm:$0xff]
        %v653 = vld [vmem:[#allocation11 + $0x1f0] sm:$0xff]
        %v654 = vld [vmem:[#allocation11 + $0x1f8] sm:$0xff]
        %v655 = vld [vmem:[#allocation2] sm:$0xff]
        %v656 = vld [vmem:[#allocation3] sm:$0xff]
        %v657 = vld [vmem:[#allocation4] sm:$0xff]
        %v658 = vld [vmem:[#allocation4 + $0x8] sm:$0xff]
        %v659 = vld [vmem:[#allocation4 + $0x10] sm:$0xff]
        %v660 = vld [vmem:[#allocation4 + $0x18] sm:$0xff]
        %661 = vmatprep.subr.mxu0 %v652
        %662 = vmatpush1.msra.mxu0 %v651
        %663 = vmatprep.subr.mxu0 %v648
        %664 = vmatpush1.msra.mxu0 %v647
        %665 = vmatprep.subr.mxu0 %v644
        %666 = vmatpush1.msra.mxu0 %v643
        %667 = vmatprep.subr.mxu0 %v640
        %668 = vmatpush1.msra.mxu0 %v639
        %669 = vmatprep.subr.mxu0 %v636
        %670 = vmatpush1.msra.mxu0 %v635
        %671 = vmatprep.subr.mxu0 %v632
        %672 = vmatpush1.msra.mxu0 %v631
        %673 = vmatprep.subr.mxu0 %v628
        %674 = vmatpush1.msra.mxu0 %v627
        %675 = vmatprep.subr.mxu0 %v624
        %676 = vmatpush1.msra.mxu0 %v623
        %677 = vmatprep.subr.mxu0 %v620
        %678 = vmatpush1.msra.mxu0 %v619
        %679 = vmatprep.subr.mxu0 %v616
        %680 = vmatpush1.msra.mxu0 %v615
        %681 = vmatprep.subr.mxu0 %v612
        %682 = vmatpush1.msra.mxu0 %v611
        %683 = vmatprep.subr.mxu0 %v608
        %684 = vmatpush1.msra.mxu0 %v607
        %685 = vmatprep.subr.mxu0 %v604
        %686 = vmatpush1.msra.mxu0 %v603
        %687 = vmatprep.subr.mxu0 %v600
        %688 = vmatpush1.msra.mxu0 %v599
        %689 = vmatprep.subr.mxu0 %v596
        %690 = vmatpush1.msra.mxu0 %v595
        %691 = vmatprep.subr.mxu0 %v592
        %692 = vmatpush1.msra.mxu0 %v591
        %693 = vmatprep.subr.mxu0 0.0
        %694 = vmatpush2.msra.mxu0 0.0
        %695 = vmatprep.subr.mxu0 0.0
        %696 = vmatpush2.msra.mxu0 0.0
        %697 = vmatprep.subr.mxu0 0.0
        %698 = vmatpush2.msra.mxu0 0.0
        %699 = vmatprep.subr.mxu0 0.0
        %700 = vmatpush2.msra.mxu0 0.0
        %701 = vmatprep.subr.mxu0 0.0
        %702 = vmatpush2.msra.mxu0 0.0
        %703 = vmatprep.subr.mxu0 0.0
        %704 = vmatpush2.msra.mxu0 0.0
        %705 = vmatprep.subr.mxu0 0.0
        %706 = vmatpush2.msra.mxu0 0.0
        %707 = vmatprep.subr.mxu0 0.0
        %708 = vmatpush2.msra.mxu0 0.0
        %709 = vmatprep.subr.mxu0 0.0
        %710 = vmatpush2.msra.mxu0 0.0
        %711 = vmatprep.subr.mxu0 0.0
        %712 = vmatpush2.msra.mxu0 0.0
        %713 = vmatprep.subr.mxu0 0.0
        %714 = vmatpush2.msra.mxu0 0.0
        %715 = vmatprep.subr.mxu0 0.0
        %716 = vmatpush2.msra.mxu0 0.0
        %717 = vmatprep.subr.mxu0 0.0
        %718 = vmatpush2.msra.mxu0 0.0
        %719 = vmatprep.subr.mxu0 0.0
        %720 = vmatpush2.msra.mxu0 0.0
        %721 = vmatprep.subr.mxu0 0.0
        %722 = vmatpush2.msra.mxu0 0.0
        %723 = vmatprep.subr.mxu0 0.0
        %724 = vmatpush2.msra.mxu0 0.0
        %725 = vmatprep.mubr.f32.mxu0 0.0
        %726 = vmatmul.mubr.f32.gmra.mxu0 %v655
        %v727 = vpop.f32.mrf.mxu0
        %v728 = vadd.f32 0.0, %v727
        %v729 = vpop.f32.mrf.mxu0
        %v730 = vadd.f32 0.0, %v729
        %731 = vdwg.mxu0
        %732 = vmatprep.subr.mxu0 %v654
        %733 = vmatpush1.msra.mxu0 %v653
        %734 = vmatprep.subr.mxu0 %v650
        %735 = vmatpush1.msra.mxu0 %v649
        %736 = vmatprep.subr.mxu0 %v646
        %737 = vmatpush1.msra.mxu0 %v645
        %738 = vmatprep.subr.mxu0 %v642
        %739 = vmatpush1.msra.mxu0 %v641
        %740 = vmatprep.subr.mxu0 %v638
        %741 = vmatpush1.msra.mxu0 %v637
        %742 = vmatprep.subr.mxu0 %v634
        %743 = vmatpush1.msra.mxu0 %v633
        %744 = vmatprep.subr.mxu0 %v630
        %745 = vmatpush1.msra.mxu0 %v629
        %746 = vmatprep.subr.mxu0 %v626
        %747 = vmatpush1.msra.mxu0 %v625
        %748 = vmatprep.subr.mxu0 %v622
        %749 = vmatpush1.msra.mxu0 %v621
        %750 = vmatprep.subr.mxu0 %v618
        %751 = vmatpush1.msra.mxu0 %v617
        %752 = vmatprep.subr.mxu0 %v614
        %753 = vmatpush1.msra.mxu0 %v613
        %754 = vmatprep.subr.mxu0 %v610
        %755 = vmatpush1.msra.mxu0 %v609
        %756 = vmatprep.subr.mxu0 %v606
        %757 = vmatpush1.msra.mxu0 %v605
        %758 = vmatprep.subr.mxu0 %v602
        %759 = vmatpush1.msra.mxu0 %v601
        %760 = vmatprep.subr.mxu0 %v598
        %761 = vmatpush1.msra.mxu0 %v597
        %762 = vmatprep.subr.mxu0 %v594
        %763 = vmatpush1.msra.mxu0 %v593
        %764 = vmatprep.subr.mxu0 0.0
        %765 = vmatpush2.msra.mxu0 0.0
        %766 = vmatprep.subr.mxu0 0.0
        %767 = vmatpush2.msra.mxu0 0.0
        %768 = vmatprep.subr.mxu0 0.0
        %769 = vmatpush2.msra.mxu0 0.0
        %770 = vmatprep.subr.mxu0 0.0
        %771 = vmatpush2.msra.mxu0 0.0
        %772 = vmatprep.subr.mxu0 0.0
        %773 = vmatpush2.msra.mxu0 0.0
        %774 = vmatprep.subr.mxu0 0.0
        %775 = vmatpush2.msra.mxu0 0.0
        %776 = vmatprep.subr.mxu0 0.0
        %777 = vmatpush2.msra.mxu0 0.0
        %778 = vmatprep.subr.mxu0 0.0
        %779 = vmatpush2.msra.mxu0 0.0
        %780 = vmatprep.subr.mxu0 0.0
        %781 = vmatpush2.msra.mxu0 0.0
        %782 = vmatprep.subr.mxu0 0.0
        %783 = vmatpush2.msra.mxu0 0.0
        %784 = vmatprep.subr.mxu0 0.0
        %785 = vmatpush2.msra.mxu0 0.0
        %786 = vmatprep.subr.mxu0 0.0
        %787 = vmatpush2.msra.mxu0 0.0
        %788 = vmatprep.subr.mxu0 0.0
        %789 = vmatpush2.msra.mxu0 0.0
        %790 = vmatprep.subr.mxu0 0.0
        %791 = vmatpush2.msra.mxu0 0.0
        %792 = vmatprep.subr.mxu0 0.0
        %793 = vmatpush2.msra.mxu0 0.0
        %794 = vmatprep.subr.mxu0 0.0
        %795 = vmatpush2.msra.mxu0 0.0
        %796 = vmatprep.mubr.f32.mxu0 0.0
        %797 = vmatmul.mubr.f32.gmra.mxu0 %v655
        %v798 = vpop.f32.mrf.mxu0
        %v799 = vadd.f32 0.0, %v798
        %v800 = vpop.f32.mrf.mxu0
        %v801 = vadd.f32 0.0, %v800
        %802 = vdwg.mxu0
        %v803 = vadd.f32 %v657, %v728
        %v804 = vadd.f32 %v658, %v730
        %v805 = vadd.f32 %v659, %v799
        %v806 = vadd.f32 %v660, %v801
        %v807 = vxor.u32 %v803, 2147483648
        %v808 = vmul.f32 %v807, 1.442695
        %v809 = vpow.pop %v808
        %v810 = vadd.f32 %v809, 1.0
        %v811 = vrcp.pop %v810
        %v812 = vmul.f32 1.0, %v811
        %v813 = vxor.u32 %v804, 2147483648
        %v814 = vmul.f32 %v813, 1.442695
        %v815 = vpow.pop %v814
        %v816 = vadd.f32 %v815, 1.0
        %v817 = vrcp.pop %v816
        %v818 = vmul.f32 1.0, %v817
        %v819 = vtanh.pop %v805
        %v820 = vxor.u32 %v806, 2147483648
        %v821 = vmul.f32 %v820, 1.442695
        %v822 = vpow.pop %v821
        %v823 = vadd.f32 %v822, 1.0
        %v824 = vrcp.pop %v823
        %v825 = vmul.f32 1.0, %v824
        %v826 = vmul.f32 %v818, %v656
        %v827 = vmul.f32 %v812, %v819
        %v828 = vadd.f32 %v826, %v827
        %v829 = vtanh.pop %v828
        %v830 = vmul.f32 %v825, %v829
        %831 = vst [vmem:[#allocation5] sm:$0xff] %v830
        %s832 = scalar_lea.vmem [#allocation4], 32
        %v833 = vld [vmem:[%s832] sm:$0xff]
        %v834 = vld [vmem:[%s832 + $0x8] sm:$0xff]
        %v835 = vld [vmem:[%s832 + $0x10] sm:$0xff]
        %v836 = vld [vmem:[%s832 + $0x18] sm:$0xff]
        %837 = vmatprep.subr.mxu0 %v652
        %838 = vmatpush1.msra.mxu0 %v651
        %839 = vmatprep.subr.mxu0 %v648
        %840 = vmatpush1.msra.mxu0 %v647
        %841 = vmatprep.subr.mxu0 %v644
        %842 = vmatpush1.msra.mxu0 %v643
        %843 = vmatprep.subr.mxu0 %v640
        %844 = vmatpush1.msra.mxu0 %v639
        %845 = vmatprep.subr.mxu0 %v636
        %846 = vmatpush1.msra.mxu0 %v635
        %847 = vmatprep.subr.mxu0 %v632
        %848 = vmatpush1.msra.mxu0 %v631
        %849 = vmatprep.subr.mxu0 %v628
        %850 = vmatpush1.msra.mxu0 %v627
        %851 = vmatprep.subr.mxu0 %v624
        %852 = vmatpush1.msra.mxu0 %v623
        %853 = vmatprep.subr.mxu0 %v620
        %854 = vmatpush1.msra.mxu0 %v619
        %855 = vmatprep.subr.mxu0 %v616
        %856 = vmatpush1.msra.mxu0 %v615
        %857 = vmatprep.subr.mxu0 %v612
        %858 = vmatpush1.msra.mxu0 %v611
        %859 = vmatprep.subr.mxu0 %v608
        %860 = vmatpush1.msra.mxu0 %v607
        %861 = vmatprep.subr.mxu0 %v604
        %862 = vmatpush1.msra.mxu0 %v603
        %863 = vmatprep.subr.mxu0 %v600
        %864 = vmatpush1.msra.mxu0 %v599
        %865 = vmatprep.subr.mxu0 %v596
        %866 = vmatpush1.msra.mxu0 %v595
        %867 = vmatprep.subr.mxu0 %v592
        %868 = vmatpush1.msra.mxu0 %v591
        %869 = vmatprep.subr.mxu0 0.0
        %870 = vmatpush2.msra.mxu0 0.0
        %871 = vmatprep.subr.mxu0 0.0
        %872 = vmatpush2.msra.mxu0 0.0
        %873 = vmatprep.subr.mxu0 0.0
        %874 = vmatpush2.msra.mxu0 0.0
        %875 = vmatprep.subr.mxu0 0.0
        %876 = vmatpush2.msra.mxu0 0.0
        %877 = vmatprep.subr.mxu0 0.0
        %878 = vmatpush2.msra.mxu0 0.0
        %879 = vmatprep.subr.mxu0 0.0
        %880 = vmatpush2.msra.mxu0 0.0
        %881 = vmatprep.subr.mxu0 0.0
        %882 = vmatpush2.msra.mxu0 0.0
        %883 = vmatprep.subr.mxu0 0.0
        %884 = vmatpush2.msra.mxu0 0.0
        %885 = vmatprep.subr.mxu0 0.0
        %886 = vmatpush2.msra.mxu0 0.0
        %887 = vmatprep.subr.mxu0 0.0
        %888 = vmatpush2.msra.mxu0 0.0
        %889 = vmatprep.subr.mxu0 0.0
        %890 = vmatpush2.msra.mxu0 0.0
        %891 = vmatprep.subr.mxu0 0.0
        %892 = vmatpush2.msra.mxu0 0.0
        %893 = vmatprep.subr.mxu0 0.0
        %894 = vmatpush2.msra.mxu0 0.0
        %895 = vmatprep.subr.mxu0 0.0
        %896 = vmatpush2.msra.mxu0 0.0
        %897 = vmatprep.subr.mxu0 0.0
        %898 = vmatpush2.msra.mxu0 0.0
        %899 = vmatprep.subr.mxu0 0.0
        %900 = vmatpush2.msra.mxu0 0.0
        %901 = vmatprep.mubr.f32.mxu0 0.0
        %902 = vmatmul.mubr.f32.gmra.mxu0 %v830
        %v903 = vpop.f32.mrf.mxu0
        %v904 = vadd.f32 0.0, %v903
        %v905 = vpop.f32.mrf.mxu0
        %v906 = vadd.f32 0.0, %v905
        %907 = vdwg.mxu0
        %908 = vmatprep.subr.mxu0 %v654
        %909 = vmatpush1.msra.mxu0 %v653
        %910 = vmatprep.subr.mxu0 %v650
        %911 = vmatpush1.msra.mxu0 %v649
        %912 = vmatprep.subr.mxu0 %v646
        %913 = vmatpush1.msra.mxu0 %v645
        %914 = vmatprep.subr.mxu0 %v642
        %915 = vmatpush1.msra.mxu0 %v641
        %916 = vmatprep.subr.mxu0 %v638
        %917 = vmatpush1.msra.mxu0 %v637
        %918 = vmatprep.subr.mxu0 %v634
        %919 = vmatpush1.msra.mxu0 %v633
        %920 = vmatprep.subr.mxu0 %v630
        %921 = vmatpush1.msra.mxu0 %v629
        %922 = vmatprep.subr.mxu0 %v626
        %923 = vmatpush1.msra.mxu0 %v625
        %924 = vmatprep.subr.mxu0 %v622
        %925 = vmatpush1.msra.mxu0 %v621
        %926 = vmatprep.subr.mxu0 %v618
        %927 = vmatpush1.msra.mxu0 %v617
        %928 = vmatprep.subr.mxu0 %v614
        %929 = vmatpush1.msra.mxu0 %v613
        %930 = vmatprep.subr.mxu0 %v610
        %931 = vmatpush1.msra.mxu0 %v609
        %932 = vmatprep.subr.mxu0 %v606
        %933 = vmatpush1.msra.mxu0 %v605
        %934 = vmatprep.subr.mxu0 %v602
        %935 = vmatpush1.msra.mxu0 %v601
        %936 = vmatprep.subr.mxu0 %v598
        %937 = vmatpush1.msra.mxu0 %v597
        %938 = vmatprep.subr.mxu0 %v594
        %939 = vmatpush1.msra.mxu0 %v593
        %940 = vmatprep.subr.mxu0 0.0
        %941 = vmatpush2.msra.mxu0 0.0
        %942 = vmatprep.subr.mxu0 0.0
        %943 = vmatpush2.msra.mxu0 0.0
        %944 = vmatprep.subr.mxu0 0.0
        %945 = vmatpush2.msra.mxu0 0.0
        %946 = vmatprep.subr.mxu0 0.0
        %947 = vmatpush2.msra.mxu0 0.0
        %948 = vmatprep.subr.mxu0 0.0
        %949 = vmatpush2.msra.mxu0 0.0
        %950 = vmatprep.subr.mxu0 0.0
        %951 = vmatpush2.msra.mxu0 0.0
        %952 = vmatprep.subr.mxu0 0.0
        %953 = vmatpush2.msra.mxu0 0.0
        %954 = vmatprep.subr.mxu0 0.0
        %955 = vmatpush2.msra.mxu0 0.0
        %956 = vmatprep.subr.mxu0 0.0
        %957 = vmatpush2.msra.mxu0 0.0
        %958 = vmatprep.subr.mxu0 0.0
        %959 = vmatpush2.msra.mxu0 0.0
        %960 = vmatprep.subr.mxu0 0.0
        %961 = vmatpush2.msra.mxu0 0.0
        %962 = vmatprep.subr.mxu0 0.0
        %963 = vmatpush2.msra.mxu0 0.0
        %964 = vmatprep.subr.mxu0 0.0
        %965 = vmatpush2.msra.mxu0 0.0
        %966 = vmatprep.subr.mxu0 0.0
        %967 = vmatpush2.msra.mxu0 0.0
        %968 = vmatprep.subr.mxu0 0.0
        %969 = vmatpush2.msra.mxu0 0.0
        %970 = vmatprep.subr.mxu0 0.0
        %971 = vmatpush2.msra.mxu0 0.0
        %972 = vmatprep.mubr.f32.mxu0 0.0
        %973 = vmatmul.mubr.f32.gmra.mxu0 %v830
        %v974 = vpop.f32.mrf.mxu0
        %v975 = vadd.f32 0.0, %v974
        %v976 = vpop.f32.mrf.mxu0
        %v977 = vadd.f32 0.0, %v976
        %978 = vdwg.mxu0
        %v979 = vadd.f32 %v833, %v904
        %v980 = vadd.f32 %v834, %v906
        %v981 = vadd.f32 %v835, %v975
        %v982 = vadd.f32 %v836, %v977
        %v983 = vxor.u32 %v979, 2147483648
        %v984 = vmul.f32 %v983, 1.442695
        %v985 = vpow.pop %v984
        %v986 = vadd.f32 %v985, 1.0
        %v987 = vrcp.pop %v986
        %v988 = vmul.f32 1.0, %v987
        %v989 = vxor.u32 %v980, 2147483648
        %v990 = vmul.f32 %v989, 1.442695
        %v991 = vpow.pop %v990
        %v992 = vadd.f32 %v991, 1.0
        %v993 = vrcp.pop %v992
        %v994 = vmul.f32 1.0, %v993
        %v995 = vtanh.pop %v981
        %v996 = vxor.u32 %v982, 2147483648
        %v997 = vmul.f32 %v996, 1.442695
        %v998 = vpow.pop %v997
        %v999 = vadd.f32 %v998, 1.0
        %v1000 = vrcp.pop %v999
        %v1001 = vmul.f32 1.0, %v1000
        %v1002 = vmul.f32 %v994, %v828
        %v1003 = vmul.f32 %v988, %v995
        %v1004 = vadd.f32 %v1002, %v1003
        %v1005 = vtanh.pop %v1004
        %v1006 = vmul.f32 %v1001, %v1005
        %s1007 = scalar_lea.vmem [#allocation5], 8
        %1008 = vst [vmem:[%s1007] sm:$0xff] %v1006
        %s1009 = scalar_lea.vmem [#allocation4], 64
        %v1010 = vld [vmem:[%s1009] sm:$0xff]
        %v1011 = vld [vmem:[%s1009 + $0x8] sm:$0xff]
        %v1012 = vld [vmem:[%s1009 + $0x10] sm:$0xff]
        %v1013 = vld [vmem:[%s1009 + $0x18] sm:$0xff]
        %1014 = vmatprep.subr.mxu0 %v652
        %1015 = vmatpush1.msra.mxu0 %v651
        %1016 = vmatprep.subr.mxu0 %v648
        %1017 = vmatpush1.msra.mxu0 %v647
        %1018 = vmatprep.subr.mxu0 %v644
        %1019 = vmatpush1.msra.mxu0 %v643
        %1020 = vmatprep.subr.mxu0 %v640
        %1021 = vmatpush1.msra.mxu0 %v639
        %1022 = vmatprep.subr.mxu0 %v636
        %1023 = vmatpush1.msra.mxu0 %v635
        %1024 = vmatprep.subr.mxu0 %v632
        %1025 = vmatpush1.msra.mxu0 %v631
        %1026 = vmatprep.subr.mxu0 %v628
        %1027 = vmatpush1.msra.mxu0 %v627
        %1028 = vmatprep.subr.mxu0 %v624
        %1029 = vmatpush1.msra.mxu0 %v623
        %1030 = vmatprep.subr.mxu0 %v620
        %1031 = vmatpush1.msra.mxu0 %v619
        %1032 = vmatprep.subr.mxu0 %v616
        %1033 = vmatpush1.msra.mxu0 %v615
        %1034 = vmatprep.subr.mxu0 %v612
        %1035 = vmatpush1.msra.mxu0 %v611
        %1036 = vmatprep.subr.mxu0 %v608
        %1037 = vmatpush1.msra.mxu0 %v607
        %1038 = vmatprep.subr.mxu0 %v604
        %1039 = vmatpush1.msra.mxu0 %v603
        %1040 = vmatprep.subr.mxu0 %v600
        %1041 = vmatpush1.msra.mxu0 %v599
        %1042 = vmatprep.subr.mxu0 %v596
        %1043 = vmatpush1.msra.mxu0 %v595
        %1044 = vmatprep.subr.mxu0 %v592
        %1045 = vmatpush1.msra.mxu0 %v591
        %1046 = vmatprep.subr.mxu0 0.0
        %1047 = vmatpush2.msra.mxu0 0.0
        %1048 = vmatprep.subr.mxu0 0.0
        %1049 = vmatpush2.msra.mxu0 0.0
        %1050 = vmatprep.subr.mxu0 0.0
        %1051 = vmatpush2.msra.mxu0 0.0
        %1052 = vmatprep.subr.mxu0 0.0
        %1053 = vmatpush2.msra.mxu0 0.0
        %1054 = vmatprep.subr.mxu0 0.0
        %1055 = vmatpush2.msra.mxu0 0.0
        %1056 = vmatprep.subr.mxu0 0.0
        %1057 = vmatpush2.msra.mxu0 0.0
        %1058 = vmatprep.subr.mxu0 0.0
        %1059 = vmatpush2.msra.mxu0 0.0
        %1060 = vmatprep.subr.mxu0 0.0
        %1061 = vmatpush2.msra.mxu0 0.0
        %1062 = vmatprep.subr.mxu0 0.0
        %1063 = vmatpush2.msra.mxu0 0.0
        %1064 = vmatprep.subr.mxu0 0.0
        %1065 = vmatpush2.msra.mxu0 0.0
        %1066 = vmatprep.subr.mxu0 0.0
        %1067 = vmatpush2.msra.mxu0 0.0
        %1068 = vmatprep.subr.mxu0 0.0
        %1069 = vmatpush2.msra.mxu0 0.0
        %1070 = vmatprep.subr.mxu0 0.0
        %1071 = vmatpush2.msra.mxu0 0.0
        %1072 = vmatprep.subr.mxu0 0.0
        %1073 = vmatpush2.msra.mxu0 0.0
        %1074 = vmatprep.subr.mxu0 0.0
        %1075 = vmatpush2.msra.mxu0 0.0
        %1076 = vmatprep.subr.mxu0 0.0
        %1077 = vmatpush2.msra.mxu0 0.0
        %1078 = vmatprep.mubr.f32.mxu0 0.0
        %1079 = vmatmul.mubr.f32.gmra.mxu0 %v1006
        %v1080 = vpop.f32.mrf.mxu0
        %v1081 = vadd.f32 0.0, %v1080
        %v1082 = vpop.f32.mrf.mxu0
        %v1083 = vadd.f32 0.0, %v1082
        %1084 = vdwg.mxu0
        %1085 = vmatprep.subr.mxu0 %v654
        %1086 = vmatpush1.msra.mxu0 %v653
        %1087 = vmatprep.subr.mxu0 %v650
        %1088 = vmatpush1.msra.mxu0 %v649
        %1089 = vmatprep.subr.mxu0 %v646
        %1090 = vmatpush1.msra.mxu0 %v645
        %1091 = vmatprep.subr.mxu0 %v642
        %1092 = vmatpush1.msra.mxu0 %v641
        %1093 = vmatprep.subr.mxu0 %v638
        %1094 = vmatpush1.msra.mxu0 %v637
        %1095 = vmatprep.subr.mxu0 %v634
        %1096 = vmatpush1.msra.mxu0 %v633
        %1097 = vmatprep.subr.mxu0 %v630
        %1098 = vmatpush1.msra.mxu0 %v629
        %1099 = vmatprep.subr.mxu0 %v626
        %1100 = vmatpush1.msra.mxu0 %v625
        %1101 = vmatprep.subr.mxu0 %v622
        %1102 = vmatpush1.msra.mxu0 %v621
        %1103 = vmatprep.subr.mxu0 %v618
        %1104 = vmatpush1.msra.mxu0 %v617
        %1105 = vmatprep.subr.mxu0 %v614
        %1106 = vmatpush1.msra.mxu0 %v613
        %1107 = vmatprep.subr.mxu0 %v610
        %1108 = vmatpush1.msra.mxu0 %v609
        %1109 = vmatprep.subr.mxu0 %v606
        %1110 = vmatpush1.msra.mxu0 %v605
        %1111 = vmatprep.subr.mxu0 %v602
        %1112 = vmatpush1.msra.mxu0 %v601
        %1113 = vmatprep.subr.mxu0 %v598
        %1114 = vmatpush1.msra.mxu0 %v597
        %1115 = vmatprep.subr.mxu0 %v594
        %1116 = vmatpush1.msra.mxu0 %v593
        %1117 = vmatprep.subr.mxu0 0.0
        %1118 = vmatpush2.msra.mxu0 0.0
        %1119 = vmatprep.subr.mxu0 0.0
        %1120 = vmatpush2.msra.mxu0 0.0
        %1121 = vmatprep.subr.mxu0 0.0
        %1122 = vmatpush2.msra.mxu0 0.0
        %1123 = vmatprep.subr.mxu0 0.0
        %1124 = vmatpush2.msra.mxu0 0.0
        %1125 = vmatprep.subr.mxu0 0.0
        %1126 = vmatpush2.msra.mxu0 0.0
        %1127 = vmatprep.subr.mxu0 0.0
        %1128 = vmatpush2.msra.mxu0 0.0
        %1129 = vmatprep.subr.mxu0 0.0
        %1130 = vmatpush2.msra.mxu0 0.0
        %1131 = vmatprep.subr.mxu0 0.0
        %1132 = vmatpush2.msra.mxu0 0.0
        %1133 = vmatprep.subr.mxu0 0.0
        %1134 = vmatpush2.msra.mxu0 0.0
        %1135 = vmatprep.subr.mxu0 0.0
        %1136 = vmatpush2.msra.mxu0 0.0
        %1137 = vmatprep.subr.mxu0 0.0
        %1138 = vmatpush2.msra.mxu0 0.0
        %1139 = vmatprep.subr.mxu0 0.0
        %1140 = vmatpush2.msra.mxu0 0.0
        %1141 = vmatprep.subr.mxu0 0.0
        %1142 = vmatpush2.msra.mxu0 0.0
        %1143 = vmatprep.subr.mxu0 0.0
        %1144 = vmatpush2.msra.mxu0 0.0
        %1145 = vmatprep.subr.mxu0 0.0
        %1146 = vmatpush2.msra.mxu0 0.0
        %1147 = vmatprep.subr.mxu0 0.0
        %1148 = vmatpush2.msra.mxu0 0.0
        %1149 = vmatprep.mubr.f32.mxu0 0.0
        %1150 = vmatmul.mubr.f32.gmra.mxu0 %v1006
        %v1151 = vpop.f32.mrf.mxu0
        %v1152 = vadd.f32 0.0, %v1151
        %v1153 = vpop.f32.mrf.mxu0
        %v1154 = vadd.f32 0.0, %v1153
        %1155 = vdwg.mxu0
        %v1156 = vadd.f32 %v1010, %v1081
        %v1157 = vadd.f32 %v1011, %v1083
        %v1158 = vadd.f32 %v1012, %v1152
        %v1159 = vadd.f32 %v1013, %v1154
        %v1160 = vxor.u32 %v1156, 2147483648
        %v1161 = vmul.f32 %v1160, 1.442695
        %v1162 = vpow.pop %v1161
        %v1163 = vadd.f32 %v1162, 1.0
        %v1164 = vrcp.pop %v1163
        %v1165 = vmul.f32 1.0, %v1164
        %v1166 = vxor.u32 %v1157, 2147483648
        %v1167 = vmul.f32 %v1166, 1.442695
        %v1168 = vpow.pop %v1167
        %v1169 = vadd.f32 %v1168, 1.0
        %v1170 = vrcp.pop %v1169
        %v1171 = vmul.f32 1.0, %v1170
        %v1172 = vtanh.pop %v1158
        %v1173 = vxor.u32 %v1159, 2147483648
        %v1174 = vmul.f32 %v1173, 1.442695
        %v1175 = vpow.pop %v1174
        %v1176 = vadd.f32 %v1175, 1.0
        %v1177 = vrcp.pop %v1176
        %v1178 = vmul.f32 1.0, %v1177
        %v1179 = vmul.f32 %v1171, %v1004
        %v1180 = vmul.f32 %v1165, %v1172
        %v1181 = vadd.f32 %v1179, %v1180
        %v1182 = vtanh.pop %v1181
        %v1183 = vmul.f32 %v1178, %v1182
        %s1184 = scalar_lea.vmem [#allocation5], 16
        %1185 = vst [vmem:[%s1184] sm:$0xff] %v1183
        %s1186 = scalar_lea.vmem [#allocation4], 96
        %v1187 = vld [vmem:[%s1186] sm:$0xff]
        %v1188 = vld [vmem:[%s1186 + $0x8] sm:$0xff]
        %v1189 = vld [vmem:[%s1186 + $0x10] sm:$0xff]
        %v1190 = vld [vmem:[%s1186 + $0x18] sm:$0xff]
        %1191 = vmatprep.subr.mxu0 %v652
        %1192 = vmatpush1.msra.mxu0 %v651
        %1193 = vmatprep.subr.mxu0 %v648
        %1194 = vmatpush1.msra.mxu0 %v647
        %1195 = vmatprep.subr.mxu0 %v644
        %1196 = vmatpush1.msra.mxu0 %v643
        %1197 = vmatprep.subr.mxu0 %v640
        %1198 = vmatpush1.msra.mxu0 %v639
        %1199 = vmatprep.subr.mxu0 %v636
        %1200 = vmatpush1.msra.mxu0 %v635
        %1201 = vmatprep.subr.mxu0 %v632
        %1202 = vmatpush1.msra.mxu0 %v631
        %1203 = vmatprep.subr.mxu0 %v628
        %1204 = vmatpush1.msra.mxu0 %v627
        %1205 = vmatprep.subr.mxu0 %v624
        %1206 = vmatpush1.msra.mxu0 %v623
        %1207 = vmatprep.subr.mxu0 %v620
        %1208 = vmatpush1.msra.mxu0 %v619
        %1209 = vmatprep.subr.mxu0 %v616
        %1210 = vmatpush1.msra.mxu0 %v615
        %1211 = vmatprep.subr.mxu0 %v612
        %1212 = vmatpush1.msra.mxu0 %v611
        %1213 = vmatprep.subr.mxu0 %v608
        %1214 = vmatpush1.msra.mxu0 %v607
        %1215 = vmatprep.subr.mxu0 %v604
        %1216 = vmatpush1.msra.mxu0 %v603
        %1217 = vmatprep.subr.mxu0 %v600
        %1218 = vmatpush1.msra.mxu0 %v599
        %1219 = vmatprep.subr.mxu0 %v596
        %1220 = vmatpush1.msra.mxu0 %v595
        %1221 = vmatprep.subr.mxu0 %v592
        %1222 = vmatpush1.msra.mxu0 %v591
        %1223 = vmatprep.subr.mxu0 0.0
        %1224 = vmatpush2.msra.mxu0 0.0
        %1225 = vmatprep.subr.mxu0 0.0
        %1226 = vmatpush2.msra.mxu0 0.0
        %1227 = vmatprep.subr.mxu0 0.0
        %1228 = vmatpush2.msra.mxu0 0.0
        %1229 = vmatprep.subr.mxu0 0.0
        %1230 = vmatpush2.msra.mxu0 0.0
        %1231 = vmatprep.subr.mxu0 0.0
        %1232 = vmatpush2.msra.mxu0 0.0
        %1233 = vmatprep.subr.mxu0 0.0
        %1234 = vmatpush2.msra.mxu0 0.0
        %1235 = vmatprep.subr.mxu0 0.0
        %1236 = vmatpush2.msra.mxu0 0.0
        %1237 = vmatprep.subr.mxu0 0.0
        %1238 = vmatpush2.msra.mxu0 0.0
        %1239 = vmatprep.subr.mxu0 0.0
        %1240 = vmatpush2.msra.mxu0 0.0
        %1241 = vmatprep.subr.mxu0 0.0
        %1242 = vmatpush2.msra.mxu0 0.0
        %1243 = vmatprep.subr.mxu0 0.0
        %1244 = vmatpush2.msra.mxu0 0.0
        %1245 = vmatprep.subr.mxu0 0.0
        %1246 = vmatpush2.msra.mxu0 0.0
        %1247 = vmatprep.subr.mxu0 0.0
        %1248 = vmatpush2.msra.mxu0 0.0
        %1249 = vmatprep.subr.mxu0 0.0
        %1250 = vmatpush2.msra.mxu0 0.0
        %1251 = vmatprep.subr.mxu0 0.0
        %1252 = vmatpush2.msra.mxu0 0.0
        %1253 = vmatprep.subr.mxu0 0.0
        %1254 = vmatpush2.msra.mxu0 0.0
        %1255 = vmatprep.mubr.f32.mxu0 0.0
        %1256 = vmatmul.mubr.f32.gmra.mxu0 %v1183
        %v1257 = vpop.f32.mrf.mxu0
        %v1258 = vadd.f32 0.0, %v1257
        %v1259 = vpop.f32.mrf.mxu0
        %v1260 = vadd.f32 0.0, %v1259
        %1261 = vdwg.mxu0
        %1262 = vmatprep.subr.mxu0 %v654
        %1263 = vmatpush1.msra.mxu0 %v653
        %1264 = vmatprep.subr.mxu0 %v650
        %1265 = vmatpush1.msra.mxu0 %v649
        %1266 = vmatprep.subr.mxu0 %v646
        %1267 = vmatpush1.msra.mxu0 %v645
        %1268 = vmatprep.subr.mxu0 %v642
        %1269 = vmatpush1.msra.mxu0 %v641
        %1270 = vmatprep.subr.mxu0 %v638
        %1271 = vmatpush1.msra.mxu0 %v637
        %1272 = vmatprep.subr.mxu0 %v634
        %1273 = vmatpush1.msra.mxu0 %v633
        %1274 = vmatprep.subr.mxu0 %v630
        %1275 = vmatpush1.msra.mxu0 %v629
        %1276 = vmatprep.subr.mxu0 %v626
        %1277 = vmatpush1.msra.mxu0 %v625
        %1278 = vmatprep.subr.mxu0 %v622
        %1279 = vmatpush1.msra.mxu0 %v621
        %1280 = vmatprep.subr.mxu0 %v618
        %1281 = vmatpush1.msra.mxu0 %v617
        %1282 = vmatprep.subr.mxu0 %v614
        %1283 = vmatpush1.msra.mxu0 %v613
        %1284 = vmatprep.subr.mxu0 %v610
        %1285 = vmatpush1.msra.mxu0 %v609
        %1286 = vmatprep.subr.mxu0 %v606
        %1287 = vmatpush1.msra.mxu0 %v605
        %1288 = vmatprep.subr.mxu0 %v602
        %1289 = vmatpush1.msra.mxu0 %v601
        %1290 = vmatprep.subr.mxu0 %v598
        %1291 = vmatpush1.msra.mxu0 %v597
        %1292 = vmatprep.subr.mxu0 %v594
        %1293 = vmatpush1.msra.mxu0 %v593
        %1294 = vmatprep.subr.mxu0 0.0
        %1295 = vmatpush2.msra.mxu0 0.0
        %1296 = vmatprep.subr.mxu0 0.0
        %1297 = vmatpush2.msra.mxu0 0.0
        %1298 = vmatprep.subr.mxu0 0.0
        %1299 = vmatpush2.msra.mxu0 0.0
        %1300 = vmatprep.subr.mxu0 0.0
        %1301 = vmatpush2.msra.mxu0 0.0
        %1302 = vmatprep.subr.mxu0 0.0
        %1303 = vmatpush2.msra.mxu0 0.0
        %1304 = vmatprep.subr.mxu0 0.0
        %1305 = vmatpush2.msra.mxu0 0.0
        %1306 = vmatprep.subr.mxu0 0.0
        %1307 = vmatpush2.msra.mxu0 0.0
        %1308 = vmatprep.subr.mxu0 0.0
        %1309 = vmatpush2.msra.mxu0 0.0
        %1310 = vmatprep.subr.mxu0 0.0
        %1311 = vmatpush2.msra.mxu0 0.0
        %1312 = vmatprep.subr.mxu0 0.0
        %1313 = vmatpush2.msra.mxu0 0.0
        %1314 = vmatprep.subr.mxu0 0.0
        %1315 = vmatpush2.msra.mxu0 0.0
        %1316 = vmatprep.subr.mxu0 0.0
        %1317 = vmatpush2.msra.mxu0 0.0
        %1318 = vmatprep.subr.mxu0 0.0
        %1319 = vmatpush2.msra.mxu0 0.0
        %1320 = vmatprep.subr.mxu0 0.0
        %1321 = vmatpush2.msra.mxu0 0.0
        %1322 = vmatprep.subr.mxu0 0.0
        %1323 = vmatpush2.msra.mxu0 0.0
        %1324 = vmatprep.subr.mxu0 0.0
        %1325 = vmatpush2.msra.mxu0 0.0
        %1326 = vmatprep.mubr.f32.mxu0 0.0
        %1327 = vmatmul.mubr.f32.gmra.mxu0 %v1183
        %v1328 = vpop.f32.mrf.mxu0
        %v1329 = vadd.f32 0.0, %v1328
        %v1330 = vpop.f32.mrf.mxu0
        %v1331 = vadd.f32 0.0, %v1330
        %1332 = vdwg.mxu0
        %v1333 = vadd.f32 %v1187, %v1258
        %v1334 = vadd.f32 %v1188, %v1260
        %v1335 = vadd.f32 %v1189, %v1329
        %v1336 = vadd.f32 %v1190, %v1331
        %v1337 = vxor.u32 %v1333, 2147483648
        %v1338 = vmul.f32 %v1337, 1.442695
        %v1339 = vpow.pop %v1338
        %v1340 = vadd.f32 %v1339, 1.0
        %v1341 = vrcp.pop %v1340
        %v1342 = vmul.f32 1.0, %v1341
        %v1343 = vxor.u32 %v1334, 2147483648
        %v1344 = vmul.f32 %v1343, 1.442695
        %v1345 = vpow.pop %v1344
        %v1346 = vadd.f32 %v1345, 1.0
        %v1347 = vrcp.pop %v1346
        %v1348 = vmul.f32 1.0, %v1347
        %v1349 = vtanh.pop %v1335
        %v1350 = vxor.u32 %v1336, 2147483648
        %v1351 = vmul.f32 %v1350, 1.442695
        %v1352 = vpow.pop %v1351
        %v1353 = vadd.f32 %v1352, 1.0
        %v1354 = vrcp.pop %v1353
        %v1355 = vmul.f32 1.0, %v1354
        %v1356 = vmul.f32 %v1348, %v1181
        %v1357 = vmul.f32 %v1342, %v1349
        %v1358 = vadd.f32 %v1356, %v1357
        %v1359 = vtanh.pop %v1358
        %v1360 = vmul.f32 %v1355, %v1359
        %s1361 = scalar_lea.vmem [#allocation5], 24
        %1362 = vst [vmem:[%s1361] sm:$0xff] %v1360
        %1363 = vst [vmem:[#allocation2] sm:$0xff] %v1360
        %1364 = vst [vmem:[#allocation3] sm:$0xff] %v1358
        %v1365 = vld [vmem:[#allocation5] sm:$0xff]
        %v1366 = vld [vmem:[#allocation5 + $0x8] sm:$0xff]
        %v1367 = vld [vmem:[#allocation5 + $0x10] sm:$0xff]
        %v1368 = vld [vmem:[#allocation5 + $0x18] sm:$0xff]
        %1369 = vadd.xlane.f32.xlu0 %v1365
        %v1370 = vpop.xlane.xlu0 %1369
        %1371 = vadd.xlane.f32.xlu0 %v1366
        %v1372 = vpop.xlane.xlu0 %1371
        %1373 = vadd.xlane.f32.xlu0 %v1367
        %v1374 = vpop.xlane.xlu0 %1373
        %1375 = vadd.xlane.f32.xlu0 %v1368
        %v1376 = vpop.xlane.xlu0 %1375
        %v1377 = vmul.f32 %v1370, 0.03125
        %v1378 = vmul.f32 %v1372, 0.03125
        %v1379 = vmul.f32 %v1374, 0.03125
        %v1380 = vmul.f32 %v1376, 0.03125
        %v1381 = vmul.f32 %v1365, %v1365
        %v1382 = vmul.f32 %v1366, %v1366
        %v1383 = vmul.f32 %v1367, %v1367
        %v1384 = vmul.f32 %v1368, %v1368
        %1385 = vadd.xlane.f32.xlu0 %v1381
        %v1386 = vpop.xlane.xlu0 %1385
        %1387 = vadd.xlane.f32.xlu0 %v1382
        %v1388 = vpop.xlane.xlu0 %1387
        %1389 = vadd.xlane.f32.xlu0 %v1383
        %v1390 = vpop.xlane.xlu0 %1389
        %1391 = vadd.xlane.f32.xlu0 %v1384
        %v1392 = vpop.xlane.xlu0 %1391
        %v1393 = vmul.f32 %v1386, 0.03125
        %v1394 = vmul.f32 %v1388, 0.03125
        %v1395 = vmul.f32 %v1390, 0.03125
        %v1396 = vmul.f32 %v1392, 0.03125
        %v1397 = vmul.f32 %v1377, %v1377
        %v1398 = vmul.f32 %v1378, %v1378
        %v1399 = vmul.f32 %v1379, %v1379
        %v1400 = vmul.f32 %v1380, %v1380
        %v1401 = vsub.f32 %v1393, %v1397
        %v1402 = vsub.f32 %v1394, %v1398
        %v1403 = vsub.f32 %v1395, %v1399
        %v1404 = vsub.f32 %v1396, %v1400
        %v1405 = vmax.f32 %v1401, 0.0
        %v1406 = vmax.f32 %v1402, 0.0
        %v1407 = vmax.f32 %v1403, 0.0
        %v1408 = vmax.f32 %v1404, 0.0
        %v1409 = vsub.f32 %v1365, %v1377
        %v1410 = vsub.f32 %v1366, %v1378
        %v1411 = vsub.f32 %v1367, %v1379
        %v1412 = vsub.f32 %v1368, %v1380
        %v1413 = vadd.f32 %v1405, 1e-05
        %v1414 = vadd.f32 %v1406, 1e-05
        %v1415 = vadd.f32 %v1407, 1e-05
        %v1416 = vadd.f32 %v1408, 1e-05
        %v1417 = vrsqrt.pop %v1413
        %v1418 = vrsqrt.pop %v1414
        %v1419 = vrsqrt.pop %v1415
        %v1420 = vrsqrt.pop %v1416
        %v1421 = vmul.f32 %v1409, %v1417
        %v1422 = vmul.f32 %v1410, %v1418
        %v1423 = vmul.f32 %v1411, %v1419
        %v1424 = vmul.f32 %v1412, %v1420
        %v1425 = vld [vmem:[%s4] sm:$0x1]
        %v1427 = vlaneseq
        %v1428 = vshrl.u32 %v1427, 7
        %v1429 = vsub.s32 0, %v1428
        %v1430 = vrot.slane %v1425, %v1429
        %v1432 = vmul.f32 %v1421, %v1430
        %v1433 = vmul.f32 %v1422, %v1430
        %v1434 = vmul.f32 %v1423, %v1430
        %v1435 = vmul.f32 %v1424, %v1430
        %v1436 = vld [vmem:[%s5] sm:$0x1]
        %v1438 = vlaneseq
        %v1439 = vshrl.u32 %v1438, 7
        %v1440 = vsub.s32 0, %v1439
        %v1441 = vrot.slane %v1436, %v1440
        %v1443 = vadd.f32 %v1432, %v1441
        %v1444 = vadd.f32 %v1433, %v1441
        %v1445 = vadd.f32 %v1434, %v1441
        %v1446 = vadd.f32 %v1435, %v1441
        %1447 = vst [vmem:[%s298] sm:$0xff] %v1443
        %1448 = vst [vmem:[%s298 + $0x8] sm:$0xff] %v1444
        %1449 = vst [vmem:[%s298 + $0x10] sm:$0xff] %v1445
        %1450 = vst [vmem:[%s298 + $0x18] sm:$0xff] %v1446
        %s1451 = sand.u32 %s163, 1
        %s1452 = scalar_lea.sflag [#allocation8], %s1451
        %s1453 = sand.u32 %s163, 1
        %s1454 = smul.addr %s1453, 32
        %s1455 = scalar_lea.vmem [#allocation12], %s1454
        // Predicated region
        $region61: #{tpu_custom_call.1} parent=43 // pred_check
          %p1456 = pneg %p173
        $region62: #{tpu_custom_call.1} parent=43 // pred_check_branch
          %1458 = sbr.rel (%p1456) target = $region64
        $region63: #{tpu_custom_call.1} parent=43 // pred_region
          %s1459 = smul.u32 4, %s24
          %s1461 = ssub.s32 512, 512
          %1462 = vsyncadd %s1452, %s1461
          %s1463 = smul.addr %s1459, 128
          %s1464 = scalar_lea.hbm %s6, %s1463
          %s1465 = sshll.u32 %s1455, 4
          %s1466 = int_to_ptr.vmem [resolvable:$true] %s1465
          %1471 = dma.vmem_to_hbm [thread:$0]  %s1466, 512, %s1464, %s1452, 128, 128, 8
        $region64: #{tpu_custom_call.1} parent=43 // pred_fallthru
          _
      $region44: #{tpu_custom_call.1} parent=5 // pred_fallthru
        _
      %p1472 = scmp.le.s32.totalorder 2, %s19
      // Predicated region
      $region65: #{tpu_custom_call.1} parent=5 // pred_check
        %p1473 = pneg %p1472
      $region66: #{tpu_custom_call.1} parent=5 // pred_check_branch
        %1475 = sbr.rel (%p1473) target = $region68
      $region67: #{tpu_custom_call.1} parent=5 // pred_region
        %s1476 = ssub.s32 %s19, 2
        // Predicated region
        $region69: #{tpu_custom_call.1} parent=67 // pred_check
          %p1477 = pneg %p179
        $region70: #{tpu_custom_call.1} parent=67 // pred_check_branch
          %1479 = sbr.rel (%p1477) target = $region72
        $region71: #{tpu_custom_call.1} parent=67 // pred_region
          %s1480 = sand.u32 %s164, 1
          %s1481 = scalar_lea.sflag [#allocation8], %s1480
          %s1482 = sand.u32 %s164, 1
          %s1483 = smul.addr %s1482, 32
          %s1484 = scalar_lea.vmem [#allocation12], %s1483
          %1485 = dma.done %s1481, 512
        $region72: #{tpu_custom_call.1} parent=67 // pred_fallthru
          _
      $region68: #{tpu_custom_call.1} parent=5 // pred_fallthru
        _
    $region6: #{tpu_custom_call.1} parent=1 // loop_footer
      %s23 = sadd.s32 1, %s19
    $region7: #{tpu_custom_call.1} parent=1 // loop_footer_branch
      %18 = sbr.rel target = $region3
    $region8: #{tpu_custom_call.1} parent=1 // loop_exit
      _
    %1486 = vsyncpa [#allocation7], 1
    %s1487 = scalar_lea.sflag [#allocation7], 1
    %1488 = vsyncpa %s1487, 1
    %1489 = vsyncpa [#allocation10], 1
    %1490 = vsyncpa [#allocation8], 1
    %s1491 = scalar_lea.sflag [#allocation8], 1
    %1492 = vsyncpa %s1491, 1

</llo_original>
